<compile_context>
chip_gen: v7x
topology: tpu7x:2x2x1
jax: 0.10.0
libtpu: 0.0.40
codegen_flags: <defaults>
</compile_context>

<pallas_src>
import functools

import jax
import jax.numpy as jnp
from jax.experimental import pallas as pl
from jax.experimental.pallas import tpu as pltpu

LATENT_DIM = 256
ACTION_DIM = 32
UN_HIDDEN = 128      # uncertainty-head hidden width (fixed by the module)
MD_HIDDEN = 128      # metrics-head hidden width (fixed by the module)
MD_HIDDEN2 = 64
N_METRICS = 8
SLAB_DIM = 128       # lane-dense packed output: [:,0]=uncertainty, [:,1:9]=metrics
MAX_TILE_M = 1024    # default batch tile (sweep 512-2048 per generation if desired)
LN_EPS = 1e-5
L2_EPS = 1e-12


def _round_up(x, m):
    return ((x + m - 1) // m) * m


def _layernorm(x, gamma, beta):
    mean = jnp.mean(x, axis=-1, keepdims=True)
    xc = x - mean
    var = jnp.mean(xc * xc, axis=-1, keepdims=True)
    return xc * jax.lax.rsqrt(var + LN_EPS) * gamma + beta


def _gelu_tanh(x):
    # tanh-form GELU: transcendental goes to the (otherwise idle) EUP slot.
    # Slight divergence from PyTorch's exact erf GELU (max abs diff ~3e-3).
    return jax.nn.gelu(x, approximate=True)


def _gelu_erf(x):
    # exact erf GELU (PyTorch nn.GELU default) — used only by the pure-JAX reference.
    return jax.nn.gelu(x, approximate=False)


def fwm_dynamics_kernel(
    # activations (one batch tile, bf16)
    z_ref, a_ref,
    # action_encoder first layer params
    ae_w1, ae_b1, ae_g, ae_bt,
    # transition params (z half, folded action half, folded bias, LN/linear tail)
    tr_w1a, tr_wf, tr_b1, tr_g1, tr_bt1, tr_w2, tr_b2, tr_g2, tr_bt2,
    # fused head first layer (uncertainty || metrics): (256, 256)
    hd_w1, hd_b1,
    # uncertainty second layer as a lane vector (1,128) + scalar bias (1,1)  [f32]
    un_w2, un_b2,
    # metrics tail: (128,64), (1,64), lane-padded (64,128), (1,128)
    md_w2, md_b2, md_w3p, md_b3p,
    # outputs
    z_out, slab_out,
):
    f32 = jnp.float32
    bf16 = jnp.bfloat16
    z = z_ref[...]                       # (tm, 256) bf16
    a = a_ref[...]                       # (tm, 32)  bf16

    # ---- action_encoder: Linear(32->128) -> LayerNorm -> GELU
    #      (its second Linear 128->256 is folded into tr_wf below)
    h = jnp.dot(a, ae_w1[...], preferred_element_type=f32) + ae_b1[...]
    h = _gelu_tanh(_layernorm(h, ae_g[...], ae_bt[...]))            # (tm,128) f32

    # ---- transition on concat([z, action_latent]) with the algebraic fold:
    #      z @ tr_w1a + h @ (ae_w2 @ tr_w1b) + (tr_b1 + ae_b2 @ tr_w1b)
    t = (jnp.dot(z, tr_w1a[...], preferred_element_type=f32)
         + jnp.dot(h.astype(bf16), tr_wf[...], preferred_element_type=f32)
         + tr_b1[...])
    t = _gelu_tanh(_layernorm(t, tr_g1[...], tr_bt1[...]))
    t = jnp.dot(t.astype(bf16), tr_w2[...], preferred_element_type=f32) + tr_b2[...]
    t = _layernorm(t, tr_g2[...], tr_bt2[...])

    # ---- F.normalize(p=2, dim=1): x / max(||x||, eps) == x * rsqrt(max(||x||^2, eps^2))
    sumsq = jnp.sum(t * t, axis=-1, keepdims=True)
    z_next = t * jax.lax.rsqrt(jnp.maximum(sumsq, L2_EPS * L2_EPS))
    z_out[...] = z_next

    # ---- fused first layer of both heads: Linear(256->256) -> GELU
    zb = z_next.astype(bf16)
    hh = _gelu_tanh(jnp.dot(zb, hd_w1[...], preferred_element_type=f32) + hd_b1[...])
    u_hidden = hh[:, :UN_HIDDEN]         # (tm, 128)
    m_hidden = hh[:, UN_HIDDEN:]         # (tm, 128)

    # ---- uncertainty: Linear(128->1) as a lane reduction (no N=1 MXU pass) -> Sigmoid
    u_pre = jnp.sum(u_hidden * un_w2[...], axis=-1, keepdims=True) + un_b2[...]
    u = jax.nn.sigmoid(u_pre)            # (tm, 1)

    # ---- metrics tail: Linear(128->64) -> GELU -> Linear(64->8), lane-padded to 128
    m = _gelu_tanh(jnp.dot(m_hidden.astype(bf16), md_w2[...],
                           preferred_element_type=f32) + md_b2[...])
    slab = jnp.dot(m.astype(bf16), md_w3p[...], preferred_element_type=f32) + md_b3p[...]

    # pack uncertainty into lane 0 (lanes 1:9 already hold metrics; the rest are 0)
    lane = jax.lax.broadcasted_iota(jnp.int32, slab.shape, dimension=1)
    slab_out[...] = jnp.where(lane == 0, u, slab)


def init_params(key, latent_dim=LATENT_DIM, action_dim=ACTION_DIM):
    """Deterministic init mimicking PyTorch defaults (U(-1/sqrt(fan_in), 1/sqrt(fan_in)))."""
    keys = iter(jax.random.split(key, 32))

    def lin(in_f, out_f):
        bound = 1.0 / jnp.sqrt(jnp.float32(in_f))
        w = jax.random.uniform(next(keys), (in_f, out_f), jnp.float32, -bound, bound)
        b = jax.random.uniform(next(keys), (1, out_f), jnp.float32, -bound, bound)
        return w, b

    def ln(dim):
        return jnp.ones((1, dim), jnp.float32), jnp.zeros((1, dim), jnp.float32)

    p = {}
    # action_encoder
    p["ae_w1"], p["ae_b1"] = lin(action_dim, 128)
    p["ae_g"], p["ae_bt"] = ln(128)
    p["ae_w2"], p["ae_b2"] = lin(128, latent_dim)
    # transition (Linear(2L -> 2L) split into two [L, 2L] halves)
    tw1, tb1 = lin(2 * latent_dim, 2 * latent_dim)
    p["tr_w1a"] = tw1[:latent_dim]
    p["tr_w1b"] = tw1[latent_dim:]
    p["tr_b1"] = tb1
    p["tr_g1"], p["tr_bt1"] = ln(2 * latent_dim)
    p["tr_w2"], p["tr_b2"] = lin(2 * latent_dim, latent_dim)
    p["tr_g2"], p["tr_bt2"] = ln(latent_dim)
    # uncertainty
    p["un_w1"], p["un_b1"] = lin(latent_dim, UN_HIDDEN)
    p["un_w2"], p["un_b2"] = lin(UN_HIDDEN, 1)
    # metrics_decoder
    p["md_w1"], p["md_b1"] = lin(latent_dim, MD_HIDDEN)
    p["md_w2"], p["md_b2"] = lin(MD_HIDDEN, MD_HIDDEN2)
    p["md_w3"], p["md_b3"] = lin(MD_HIDDEN2, N_METRICS)
    return p


@functools.partial(jax.jit, static_argnames=("max_tile_m",))
def fwm_dynamics_forward(z_t, action_encoding, params, *, max_tile_m=MAX_TILE_M):
    f32, bf16 = jnp.float32, jnp.bfloat16
    B, latent_dim = z_t.shape
    action_dim = action_encoding.shape[1]
    p = params

    # --- host-side weight packing (tiny, fused under jit) ----------------------
    # Fold action_encoder's second Linear into the transition's action half (f32
    # product, then cast). Removes one full MXU pass and shrinks its K from 256->128.
    tr_wf = (p["ae_w2"] @ p["tr_w1b"]).astype(bf16)                    # (128, 2L)
    tr_b1f = p["tr_b1"] + p["ae_b2"] @ p["tr_w1b"]                     # (1, 2L) f32
    # Fuse the two head first layers into one 256->256 matmul.
    hd_w1 = jnp.concatenate([p["un_w1"], p["md_w1"]], axis=1).astype(bf16)
    hd_b1 = jnp.concatenate([p["un_b1"], p["md_b1"]], axis=1)
    un_w2 = p["un_w2"].reshape(1, UN_HIDDEN)                           # f32 (VPU reduce)
    un_b2 = p["un_b2"].reshape(1, 1)
    md_w3p = (jnp.zeros((MD_HIDDEN2, SLAB_DIM), f32)
              .at[:, 1:1 + N_METRICS].set(p["md_w3"]).astype(bf16))
    md_b3p = jnp.zeros((1, SLAB_DIM), f32).at[:, 1:1 + N_METRICS].set(p["md_b3"])

    weights = [
        p["ae_w1"].astype(bf16), p["ae_b1"], p["ae_g"], p["ae_bt"],
        p["tr_w1a"].astype(bf16), tr_wf, tr_b1f, p["tr_g1"], p["tr_bt1"],
        p["tr_w2"].astype(bf16), p["tr_b2"], p["tr_g2"], p["tr_bt2"],
        hd_w1, hd_b1, un_w2, un_b2,
        p["md_w2"].astype(bf16), p["md_b2"], md_w3p, md_b3p,
    ]

    # MXU operands in bf16 (f32 accumulation inside the kernel); outputs stay f32.
    z_bf = z_t.astype(bf16)
    a_bf = action_encoding.astype(bf16)

    # --- batch tiling -----------------------------------------------------------
    # Guarantee >=2 grid steps whenever B > 16 so dimension_semantics=("parallel",)
    # can shard the batch across both TensorCores on v7x (no-op on v5e/v6e).
    # Tile is a multiple of 16 (bf16 sublane packing) unless it covers the batch.
    if B <= 16:
        tm = B
    else:
        tm = min(max_tile_m, _round_up(pl.cdiv(B, 2), 16))
    grid = (pl.cdiv(B, tm),)

    def tiled(d):
        return pl.BlockSpec((tm, d), lambda i: (i, 0))

    def resident(arr):
        # constant block index -> DMA'd once and VMEM-resident across the grid;
        # single-buffered since the block never changes.
        return pl.BlockSpec(arr.shape, lambda i: (0, 0), pipeline_mode=pl.Buffered(1))

    in_specs = [tiled(latent_dim), tiled(action_dim)] + [resident(w) for w in weights]
    out_specs = (tiled(latent_dim), tiled(SLAB_DIM))
    out_shape = (
        jax.ShapeDtypeStruct((B, latent_dim), f32),   # z_t_next
        jax.ShapeDtypeStruct((B, SLAB_DIM), f32),     # packed [uncertainty | metrics | 0...]
    )

    # --- advisory cost estimate --------------------------------------------------
    macs_per_row = (
        action_dim * 128                               # action encoder layer 1
        + 128 * (2 * latent_dim)                       # folded action half of transition
        + latent_dim * (2 * latent_dim)                # z half of transition layer 1
        + (2 * latent_dim) * latent_dim                # transition layer 2
        + latent_dim * (UN_HIDDEN + MD_HIDDEN)         # fused head layer 1
        + UN_HIDDEN                                    # uncertainty lane reduction
        + MD_HIDDEN * MD_HIDDEN2 + MD_HIDDEN2 * SLAB_DIM
    )
    weight_bytes = sum(int(w.size) * w.dtype.itemsize for w in weights)
    io_bytes = 2 * B * (latent_dim + action_dim) + 4 * B * (latent_dim + SLAB_DIM)
    cost = pl.CostEstimate(
        flops=2 * B * macs_per_row,
        transcendentals=B * (128 + 2 * latent_dim + MD_HIDDEN + MD_HIDDEN2 + 8),
        bytes_accessed=weight_bytes + io_bytes,
    )

    z_next, slab = pl.pallas_call(
        fwm_dynamics_kernel,
        out_shape=out_shape,
        grid=grid,
        in_specs=in_specs,
        out_specs=out_specs,
        compiler_params=pltpu.CompilerParams(
            dimension_semantics=("parallel",),          # megacore sharding on v7x
            vmem_limit_bytes=48 * 1024 * 1024,          # <= v7x 64 MiB; ample on v5e/v6e
        ),
        cost_estimate=cost,
    )(z_bf, a_bf, *weights)

    uncertainty = slab[:, 0:1]
    metrics = slab[:, 1:1 + N_METRICS]
    return z_next, uncertainty, metrics


def reference_forward(z_t, action_encoding, p):
    """Pure-JAX f32 reference with exact erf GELU (matches PyTorch semantics)."""
    def lnorm(x, g, b):
        mu = jnp.mean(x, -1, keepdims=True)
        xc = x - mu
        var = jnp.mean(xc * xc, -1, keepdims=True)
        return xc / jnp.sqrt(var + LN_EPS) * g + b

    h = action_encoding @ p["ae_w1"] + p["ae_b1"]
    h = _gelu_erf(lnorm(h, p["ae_g"], p["ae_bt"]))
    al = h @ p["ae_w2"] + p["ae_b2"]
    t = z_t @ p["tr_w1a"] + al @ p["tr_w1b"] + p["tr_b1"]
    t = _gelu_erf(lnorm(t, p["tr_g1"], p["tr_bt1"]))
    t = t @ p["tr_w2"] + p["tr_b2"]
    t = lnorm(t, p["tr_g2"], p["tr_bt2"])
    zn = t / jnp.maximum(jnp.linalg.norm(t, axis=-1, keepdims=True), L2_EPS)
    u = jax.nn.sigmoid(_gelu_erf(zn @ p["un_w1"] + p["un_b1"]) @ p["un_w2"] + p["un_b2"])
    m = _gelu_erf(zn @ p["md_w1"] + p["md_b1"])
    m = _gelu_erf(m @ p["md_w2"] + p["md_b2"]) @ p["md_w3"] + p["md_b3"]
    return zn, u, m


if __name__ == "__main__":
    key = jax.random.PRNGKey(0)
    params = init_params(jax.random.fold_in(key, 1))

    def check(batch, max_tile_m=MAX_TILE_M, tol=5e-2):
        kz, ka = jax.random.split(jax.random.fold_in(key, 100 + batch), 2)
        z_t = jax.random.normal(kz, (batch, LATENT_DIM), jnp.float32)
        action_encoding = jax.random.normal(ka, (batch, ACTION_DIM), jnp.float32)

        z_next, uncertainty, metrics = fwm_dynamics_forward(
            z_t, action_encoding, params, max_tile_m=max_tile_m)
        jax.block_until_ready((z_next, uncertainty, metrics))

        z_ref, u_ref, m_ref = reference_forward(z_t, action_encoding, params)
        assert z_next.shape == (batch, LATENT_DIM)
        assert uncertainty.shape == (batch, 1)
        assert metrics.shape == (batch, N_METRICS)
        # bf16 MXU operands + tanh GELU + the ae_w2 fold change rounding/summation
        # order vs the exact-f32/erf reference, hence the loosened tolerance.
        assert jnp.allclose(z_next, z_ref, atol=tol, rtol=tol)
        assert jnp.allclose(uncertainty, u_ref, atol=tol, rtol=tol)
        assert jnp.allclose(metrics, m_ref, atol=tol, rtol=tol)

    check(batch=8)                      # single tile (block == full batch)
    check(batch=20)                     # 2 grid steps + ragged last tile
    check(batch=48, max_tile_m=32)      # multi-tile with capped tile size
    print("KERNEL_OK")
</pallas_src>

<mosaic_0001>
module attributes {stable_mosaic.version = 11 : i64} {
  func.func @fwm_dynamics_kernel(%arg0: i32, %arg1: memref<8x256xbf16, #tpu.memory_space<vmem>>, %arg2: memref<8x32xbf16, #tpu.memory_space<vmem>>, %arg3: memref<32x128xbf16, #tpu.memory_space<vmem>>, %arg4: memref<1x128xf32, #tpu.memory_space<vmem>>, %arg5: memref<1x128xf32, #tpu.memory_space<vmem>>, %arg6: memref<1x128xf32, #tpu.memory_space<vmem>>, %arg7: memref<256x512xbf16, #tpu.memory_space<vmem>>, %arg8: memref<128x512xbf16, #tpu.memory_space<vmem>>, %arg9: memref<1x512xf32, #tpu.memory_space<vmem>>, %arg10: memref<1x512xf32, #tpu.memory_space<vmem>>, %arg11: memref<1x512xf32, #tpu.memory_space<vmem>>, %arg12: memref<512x256xbf16, #tpu.memory_space<vmem>>, %arg13: memref<1x256xf32, #tpu.memory_space<vmem>>, %arg14: memref<1x256xf32, #tpu.memory_space<vmem>>, %arg15: memref<1x256xf32, #tpu.memory_space<vmem>>, %arg16: memref<256x256xbf16, #tpu.memory_space<vmem>>, %arg17: memref<1x256xf32, #tpu.memory_space<vmem>>, %arg18: memref<1x128xf32, #tpu.memory_space<vmem>>, %arg19: memref<1x1xf32, #tpu.memory_space<vmem>>, %arg20: memref<128x64xbf16, #tpu.memory_space<vmem>>, %arg21: memref<1x64xf32, #tpu.memory_space<vmem>>, %arg22: memref<64x128xbf16, #tpu.memory_space<vmem>>, %arg23: memref<1x128xf32, #tpu.memory_space<vmem>>, %arg24: memref<8x256xf32, #tpu.memory_space<vmem>>, %arg25: memref<8x128xf32, #tpu.memory_space<vmem>>) attributes {dimension_semantics = [#tpu.dimension_semantics<parallel>], iteration_bounds = array<i64: 1>, scalar_prefetch = 0 : i64, scratch_operands = 0 : i64, tpu.core_type = #tpu.core_type<tc>, window_params = [{transform_indices = @transform_0, window_bounds = array<i64: 8, 256>}, {transform_indices = @transform_1, window_bounds = array<i64: 8, 32>}, {pipeline_mode = #tpu.pipeline_mode<synchronous>, transform_indices = @transform_2, window_bounds = array<i64: 32, 128>}, {pipeline_mode = #tpu.pipeline_mode<synchronous>, transform_indices = @transform_3, window_bounds = array<i64: 1, 128>}, {pipeline_mode = #tpu.pipeline_mode<synchronous>, transform_indices = @transform_4, window_bounds = array<i64: 1, 128>}, {pipeline_mode = #tpu.pipeline_mode<synchronous>, transform_indices = @transform_5, window_bounds = array<i64: 1, 128>}, {pipeline_mode = #tpu.pipeline_mode<synchronous>, transform_indices = @transform_6, window_bounds = array<i64: 256, 512>}, {pipeline_mode = #tpu.pipeline_mode<synchronous>, transform_indices = @transform_7, window_bounds = array<i64: 128, 512>}, {pipeline_mode = #tpu.pipeline_mode<synchronous>, transform_indices = @transform_8, window_bounds = array<i64: 1, 512>}, {pipeline_mode = #tpu.pipeline_mode<synchronous>, transform_indices = @transform_9, window_bounds = array<i64: 1, 512>}, {pipeline_mode = #tpu.pipeline_mode<synchronous>, transform_indices = @transform_10, window_bounds = array<i64: 1, 512>}, {pipeline_mode = #tpu.pipeline_mode<synchronous>, transform_indices = @transform_11, window_bounds = array<i64: 512, 256>}, {pipeline_mode = #tpu.pipeline_mode<synchronous>, transform_indices = @transform_12, window_bounds = array<i64: 1, 256>}, {pipeline_mode = #tpu.pipeline_mode<synchronous>, transform_indices = @transform_13, window_bounds = array<i64: 1, 256>}, {pipeline_mode = #tpu.pipeline_mode<synchronous>, transform_indices = @transform_14, window_bounds = array<i64: 1, 256>}, {pipeline_mode = #tpu.pipeline_mode<synchronous>, transform_indices = @transform_15, window_bounds = array<i64: 256, 256>}, {pipeline_mode = #tpu.pipeline_mode<synchronous>, transform_indices = @transform_16, window_bounds = array<i64: 1, 256>}, {pipeline_mode = #tpu.pipeline_mode<synchronous>, transform_indices = @transform_17, window_bounds = array<i64: 1, 128>}, {pipeline_mode = #tpu.pipeline_mode<synchronous>, transform_indices = @transform_18, window_bounds = array<i64: 1, 1>}, {pipeline_mode = #tpu.pipeline_mode<synchronous>, transform_indices = @transform_19, window_bounds = array<i64: 128, 64>}, {pipeline_mode = #tpu.pipeline_mode<synchronous>, transform_indices = @transform_20, window_bounds = array<i64: 1, 64>}, {pipeline_mode = #tpu.pipeline_mode<synchronous>, transform_indices = @transform_21, window_bounds = array<i64: 64, 128>}, {pipeline_mode = #tpu.pipeline_mode<synchronous>, transform_indices = @transform_22, window_bounds = array<i64: 1, 128>}, {transform_indices = @transform_23, window_bounds = array<i64: 8, 256>}, {transform_indices = @transform_24, window_bounds = array<i64: 8, 128>}]} {
    %c0 = arith.constant 0 : index
    %c0_0 = arith.constant 0 : index
    %0 = vector.load %arg1[%c0, %c0_0] : memref<8x256xbf16, #tpu.memory_space<vmem>>, vector<8x256xbf16>
    %c0_1 = arith.constant 0 : index
    %c0_2 = arith.constant 0 : index
    %1 = vector.load %arg2[%c0_1, %c0_2] : memref<8x32xbf16, #tpu.memory_space<vmem>>, vector<8x32xbf16>
    %c0_3 = arith.constant 0 : index
    %c0_4 = arith.constant 0 : index
    %2 = vector.load %arg3[%c0_3, %c0_4] : memref<32x128xbf16, #tpu.memory_space<vmem>>, vector<32x128xbf16>
    %cst = arith.constant dense<0.000000e+00> : vector<8x128xf32>
    %3 = tpu.matmul %1, %2, %cst {dimension_numbers = #tpu.dot_dimension_numbers<[1], [0], [0], [1], [0, 0, 1, 1], [], []>} : vector<8x32xbf16>, vector<32x128xbf16>, vector<8x128xf32> -> vector<8x128xf32>
    %c0_5 = arith.constant 0 : index
    %c0_6 = arith.constant 0 : index
    %4 = vector.load %arg4[%c0_5, %c0_6] : memref<1x128xf32, #tpu.memory_space<vmem>>, vector<1x128xf32>
    %5 = vector.broadcast %4 : vector<1x128xf32> to vector<8x128xf32>
    %6 = arith.addf %3, %5 : vector<8x128xf32>
    %c0_7 = arith.constant 0 : index
    %c0_8 = arith.constant 0 : index
    %7 = vector.load %arg5[%c0_7, %c0_8] : memref<1x128xf32, #tpu.memory_space<vmem>>, vector<1x128xf32>
    %c0_9 = arith.constant 0 : index
    %c0_10 = arith.constant 0 : index
    %8 = vector.load %arg6[%c0_9, %c0_10] : memref<1x128xf32, #tpu.memory_space<vmem>>, vector<1x128xf32>
    %cst_11 = arith.constant dense<0.000000e+00> : vector<8xf32>
    %9 = vector.multi_reduction <add>, %6, %cst_11 [1] : vector<8x128xf32> to vector<8xf32>
    %10 = vector.shape_cast %9 : vector<8xf32> to vector<8x1xf32>
    %cst_12 = arith.constant 1.280000e+02 : f32
    %11 = vector.broadcast %cst_12 : f32 to vector<8x1xf32>
    %12 = arith.divf %10, %11 : vector<8x1xf32>
    %13 = vector.broadcast %12 : vector<8x1xf32> to vector<8x128xf32>
    %14 = arith.subf %6, %13 : vector<8x128xf32>
    %15 = arith.mulf %14, %14 : vector<8x128xf32>
    %cst_13 = arith.constant dense<0.000000e+00> : vector<8xf32>
    %16 = vector.multi_reduction <add>, %15, %cst_13 [1] : vector<8x128xf32> to vector<8xf32>
    %17 = vector.shape_cast %16 : vector<8xf32> to vector<8x1xf32>
    %cst_14 = arith.constant 1.280000e+02 : f32
    %18 = vector.broadcast %cst_14 : f32 to vector<8x1xf32>
    %19 = arith.divf %17, %18 : vector<8x1xf32>
    %cst_15 = arith.constant 9.99999974E-6 : f32
    %20 = vector.broadcast %cst_15 : f32 to vector<8x1xf32>
    %21 = arith.addf %19, %20 : vector<8x1xf32>
    %22 = math.rsqrt %21 : vector<8x1xf32>
    %23 = vector.broadcast %22 : vector<8x1xf32> to vector<8x128xf32>
    %24 = arith.mulf %14, %23 : vector<8x128xf32>
    %25 = vector.broadcast %7 : vector<1x128xf32> to vector<8x128xf32>
    %26 = arith.mulf %24, %25 : vector<8x128xf32>
    %27 = vector.broadcast %8 : vector<1x128xf32> to vector<8x128xf32>
    %28 = arith.addf %26, %27 : vector<8x128xf32>
    %29 = arith.mulf %28, %28 : vector<8x128xf32>
    %30 = arith.mulf %28, %29 : vector<8x128xf32>
    %cst_16 = arith.constant 4.471500e-02 : f32
    %31 = vector.broadcast %cst_16 : f32 to vector<8x128xf32>
    %32 = arith.mulf %31, %30 : vector<8x128xf32>
    %33 = arith.addf %28, %32 : vector<8x128xf32>
    %cst_17 = arith.constant 0.797884583 : f32
    %34 = vector.broadcast %cst_17 : f32 to vector<8x128xf32>
    %35 = arith.mulf %34, %33 : vector<8x128xf32>
    %36 = math.tanh %35 : vector<8x128xf32>
    %cst_18 = arith.constant 1.000000e+00 : f32
    %37 = vector.broadcast %cst_18 : f32 to vector<8x128xf32>
    %38 = arith.addf %37, %36 : vector<8x128xf32>
    %cst_19 = arith.constant 5.000000e-01 : f32
    %39 = vector.broadcast %cst_19 : f32 to vector<8x128xf32>
    %40 = arith.mulf %39, %38 : vector<8x128xf32>
    %41 = arith.mulf %28, %40 : vector<8x128xf32>
    %c0_20 = arith.constant 0 : index
    %c0_21 = arith.constant 0 : index
    %42 = vector.load %arg7[%c0_20, %c0_21] : memref<256x512xbf16, #tpu.memory_space<vmem>>, vector<256x512xbf16>
    %cst_22 = arith.constant dense<0.000000e+00> : vector<8x512xf32>
    %43 = tpu.matmul %0, %42, %cst_22 {dimension_numbers = #tpu.dot_dimension_numbers<[1], [0], [0], [1], [0, 0, 1, 1], [], []>} : vector<8x256xbf16>, vector<256x512xbf16>, vector<8x512xf32> -> vector<8x512xf32>
    %44 = arith.truncf %41 : vector<8x128xf32> to vector<8x128xbf16>
    %c0_23 = arith.constant 0 : index
    %c0_24 = arith.constant 0 : index
    %45 = vector.load %arg8[%c0_23, %c0_24] : memref<128x512xbf16, #tpu.memory_space<vmem>>, vector<128x512xbf16>
    %cst_25 = arith.constant dense<0.000000e+00> : vector<8x512xf32>
    %46 = tpu.matmul %44, %45, %cst_25 {dimension_numbers = #tpu.dot_dimension_numbers<[1], [0], [0], [1], [0, 0, 1, 1], [], []>} : vector<8x128xbf16>, vector<128x512xbf16>, vector<8x512xf32> -> vector<8x512xf32>
    %47 = arith.addf %43, %46 : vector<8x512xf32>
    %c0_26 = arith.constant 0 : index
    %c0_27 = arith.constant 0 : index
    %48 = vector.load %arg9[%c0_26, %c0_27] : memref<1x512xf32, #tpu.memory_space<vmem>>, vector<1x512xf32>
    %49 = vector.broadcast %48 : vector<1x512xf32> to vector<8x512xf32>
    %50 = arith.addf %47, %49 : vector<8x512xf32>
    %c0_28 = arith.constant 0 : index
    %c0_29 = arith.constant 0 : index
    %51 = vector.load %arg10[%c0_28, %c0_29] : memref<1x512xf32, #tpu.memory_space<vmem>>, vector<1x512xf32>
    %c0_30 = arith.constant 0 : index
    %c0_31 = arith.constant 0 : index
    %52 = vector.load %arg11[%c0_30, %c0_31] : memref<1x512xf32, #tpu.memory_space<vmem>>, vector<1x512xf32>
    %cst_32 = arith.constant dense<0.000000e+00> : vector<8xf32>
    %53 = vector.multi_reduction <add>, %50, %cst_32 [1] : vector<8x512xf32> to vector<8xf32>
    %54 = vector.shape_cast %53 : vector<8xf32> to vector<8x1xf32>
    %cst_33 = arith.constant 5.120000e+02 : f32
    %55 = vector.broadcast %cst_33 : f32 to vector<8x1xf32>
    %56 = arith.divf %54, %55 : vector<8x1xf32>
    %57 = vector.broadcast %56 : vector<8x1xf32> to vector<8x512xf32>
    %58 = arith.subf %50, %57 : vector<8x512xf32>
    %59 = arith.mulf %58, %58 : vector<8x512xf32>
    %cst_34 = arith.constant dense<0.000000e+00> : vector<8xf32>
    %60 = vector.multi_reduction <add>, %59, %cst_34 [1] : vector<8x512xf32> to vector<8xf32>
    %61 = vector.shape_cast %60 : vector<8xf32> to vector<8x1xf32>
    %cst_35 = arith.constant 5.120000e+02 : f32
    %62 = vector.broadcast %cst_35 : f32 to vector<8x1xf32>
    %63 = arith.divf %61, %62 : vector<8x1xf32>
    %cst_36 = arith.constant 9.99999974E-6 : f32
    %64 = vector.broadcast %cst_36 : f32 to vector<8x1xf32>
    %65 = arith.addf %63, %64 : vector<8x1xf32>
    %66 = math.rsqrt %65 : vector<8x1xf32>
    %67 = vector.broadcast %66 : vector<8x1xf32> to vector<8x512xf32>
    %68 = arith.mulf %58, %67 : vector<8x512xf32>
    %69 = vector.broadcast %51 : vector<1x512xf32> to vector<8x512xf32>
    %70 = arith.mulf %68, %69 : vector<8x512xf32>
    %71 = vector.broadcast %52 : vector<1x512xf32> to vector<8x512xf32>
    %72 = arith.addf %70, %71 : vector<8x512xf32>
    %73 = arith.mulf %72, %72 : vector<8x512xf32>
    %74 = arith.mulf %72, %73 : vector<8x512xf32>
    %cst_37 = arith.constant 4.471500e-02 : f32
    %75 = vector.broadcast %cst_37 : f32 to vector<8x512xf32>
    %76 = arith.mulf %75, %74 : vector<8x512xf32>
    %77 = arith.addf %72, %76 : vector<8x512xf32>
    %cst_38 = arith.constant 0.797884583 : f32
    %78 = vector.broadcast %cst_38 : f32 to vector<8x512xf32>
    %79 = arith.mulf %78, %77 : vector<8x512xf32>
    %80 = math.tanh %79 : vector<8x512xf32>
    %cst_39 = arith.constant 1.000000e+00 : f32
    %81 = vector.broadcast %cst_39 : f32 to vector<8x512xf32>
    %82 = arith.addf %81, %80 : vector<8x512xf32>
    %cst_40 = arith.constant 5.000000e-01 : f32
    %83 = vector.broadcast %cst_40 : f32 to vector<8x512xf32>
    %84 = arith.mulf %83, %82 : vector<8x512xf32>
    %85 = arith.mulf %72, %84 : vector<8x512xf32>
    %86 = arith.truncf %85 : vector<8x512xf32> to vector<8x512xbf16>
    %c0_41 = arith.constant 0 : index
    %c0_42 = arith.constant 0 : index
    %87 = vector.load %arg12[%c0_41, %c0_42] : memref<512x256xbf16, #tpu.memory_space<vmem>>, vector<512x256xbf16>
    %cst_43 = arith.constant dense<0.000000e+00> : vector<8x256xf32>
    %88 = tpu.matmul %86, %87, %cst_43 {dimension_numbers = #tpu.dot_dimension_numbers<[1], [0], [0], [1], [0, 0, 1, 1], [], []>} : vector<8x512xbf16>, vector<512x256xbf16>, vector<8x256xf32> -> vector<8x256xf32>
    %c0_44 = arith.constant 0 : index
    %c0_45 = arith.constant 0 : index
    %89 = vector.load %arg13[%c0_44, %c0_45] : memref<1x256xf32, #tpu.memory_space<vmem>>, vector<1x256xf32>
    %90 = vector.broadcast %89 : vector<1x256xf32> to vector<8x256xf32>
    %91 = arith.addf %88, %90 : vector<8x256xf32>
    %c0_46 = arith.constant 0 : index
    %c0_47 = arith.constant 0 : index
    %92 = vector.load %arg14[%c0_46, %c0_47] : memref<1x256xf32, #tpu.memory_space<vmem>>, vector<1x256xf32>
    %c0_48 = arith.constant 0 : index
    %c0_49 = arith.constant 0 : index
    %93 = vector.load %arg15[%c0_48, %c0_49] : memref<1x256xf32, #tpu.memory_space<vmem>>, vector<1x256xf32>
    %cst_50 = arith.constant dense<0.000000e+00> : vector<8xf32>
    %94 = vector.multi_reduction <add>, %91, %cst_50 [1] : vector<8x256xf32> to vector<8xf32>
    %95 = vector.shape_cast %94 : vector<8xf32> to vector<8x1xf32>
    %cst_51 = arith.constant 2.560000e+02 : f32
    %96 = vector.broadcast %cst_51 : f32 to vector<8x1xf32>
    %97 = arith.divf %95, %96 : vector<8x1xf32>
    %98 = vector.broadcast %97 : vector<8x1xf32> to vector<8x256xf32>
    %99 = arith.subf %91, %98 : vector<8x256xf32>
    %100 = arith.mulf %99, %99 : vector<8x256xf32>
    %cst_52 = arith.constant dense<0.000000e+00> : vector<8xf32>
    %101 = vector.multi_reduction <add>, %100, %cst_52 [1] : vector<8x256xf32> to vector<8xf32>
    %102 = vector.shape_cast %101 : vector<8xf32> to vector<8x1xf32>
    %cst_53 = arith.constant 2.560000e+02 : f32
    %103 = vector.broadcast %cst_53 : f32 to vector<8x1xf32>
    %104 = arith.divf %102, %103 : vector<8x1xf32>
    %cst_54 = arith.constant 9.99999974E-6 : f32
    %105 = vector.broadcast %cst_54 : f32 to vector<8x1xf32>
    %106 = arith.addf %104, %105 : vector<8x1xf32>
    %107 = math.rsqrt %106 : vector<8x1xf32>
    %108 = vector.broadcast %107 : vector<8x1xf32> to vector<8x256xf32>
    %109 = arith.mulf %99, %108 : vector<8x256xf32>
    %110 = vector.broadcast %92 : vector<1x256xf32> to vector<8x256xf32>
    %111 = arith.mulf %109, %110 : vector<8x256xf32>
    %112 = vector.broadcast %93 : vector<1x256xf32> to vector<8x256xf32>
    %113 = arith.addf %111, %112 : vector<8x256xf32>
    %114 = arith.mulf %113, %113 : vector<8x256xf32>
    %cst_55 = arith.constant dense<0.000000e+00> : vector<8xf32>
    %115 = vector.multi_reduction <add>, %114, %cst_55 [1] : vector<8x256xf32> to vector<8xf32>
    %116 = vector.shape_cast %115 : vector<8xf32> to vector<8x1xf32>
    %cst_56 = arith.constant 1.000000e-24 : f32
    %117 = vector.broadcast %cst_56 : f32 to vector<8x1xf32>
    %118 = arith.maximumf %116, %117 : vector<8x1xf32>
    %119 = math.rsqrt %118 : vector<8x1xf32>
    %120 = vector.broadcast %119 : vector<8x1xf32> to vector<8x256xf32>
    %121 = arith.mulf %113, %120 : vector<8x256xf32>
    %c0_57 = arith.constant 0 : index
    %c0_58 = arith.constant 0 : index
    %122 = vector.load %arg24[%c0_57, %c0_58] : memref<8x256xf32, #tpu.memory_space<vmem>>, vector<8x256xf32>
    tpu.vector_store %arg24[%c0_57, %c0_58], %121 {strides = array<i32>} : memref<8x256xf32, #tpu.memory_space<vmem>>, vector<8x256xf32>,
    %123 = arith.truncf %121 : vector<8x256xf32> to vector<8x256xbf16>
    %c0_59 = arith.constant 0 : index
    %c0_60 = arith.constant 0 : index
    %124 = vector.load %arg16[%c0_59, %c0_60] : memref<256x256xbf16, #tpu.memory_space<vmem>>, vector<256x256xbf16>
    %cst_61 = arith.constant dense<0.000000e+00> : vector<8x256xf32>
    %125 = tpu.matmul %123, %124, %cst_61 {dimension_numbers = #tpu.dot_dimension_numbers<[1], [0], [0], [1], [0, 0, 1, 1], [], []>} : vector<8x256xbf16>, vector<256x256xbf16>, vector<8x256xf32> -> vector<8x256xf32>
    %c0_62 = arith.constant 0 : index
    %c0_63 = arith.constant 0 : index
    %126 = vector.load %arg17[%c0_62, %c0_63] : memref<1x256xf32, #tpu.memory_space<vmem>>, vector<1x256xf32>
    %127 = vector.broadcast %126 : vector<1x256xf32> to vector<8x256xf32>
    %128 = arith.addf %125, %127 : vector<8x256xf32>
    %129 = arith.mulf %128, %128 : vector<8x256xf32>
    %130 = arith.mulf %128, %129 : vector<8x256xf32>
    %cst_64 = arith.constant 4.471500e-02 : f32
    %131 = vector.broadcast %cst_64 : f32 to vector<8x256xf32>
    %132 = arith.mulf %131, %130 : vector<8x256xf32>
    %133 = arith.addf %128, %132 : vector<8x256xf32>
    %cst_65 = arith.constant 0.797884583 : f32
    %134 = vector.broadcast %cst_65 : f32 to vector<8x256xf32>
    %135 = arith.mulf %134, %133 : vector<8x256xf32>
    %136 = math.tanh %135 : vector<8x256xf32>
    %cst_66 = arith.constant 1.000000e+00 : f32
    %137 = vector.broadcast %cst_66 : f32 to vector<8x256xf32>
    %138 = arith.addf %137, %136 : vector<8x256xf32>
    %cst_67 = arith.constant 5.000000e-01 : f32
    %139 = vector.broadcast %cst_67 : f32 to vector<8x256xf32>
    %140 = arith.mulf %139, %138 : vector<8x256xf32>
    %141 = arith.mulf %128, %140 : vector<8x256xf32>
    %142 = vector.extract_strided_slice %141 {offsets = [0, 0], sizes = [8, 128], strides = [1, 1]} : vector<8x256xf32> to vector<8x128xf32>
    %143 = vector.extract_strided_slice %141 {offsets = [0, 128], sizes = [8, 128], strides = [1, 1]} : vector<8x256xf32> to vector<8x128xf32>
    %c0_68 = arith.constant 0 : index
    %c0_69 = arith.constant 0 : index
    %144 = vector.load %arg18[%c0_68, %c0_69] : memref<1x128xf32, #tpu.memory_space<vmem>>, vector<1x128xf32>
    %145 = vector.broadcast %144 : vector<1x128xf32> to vector<8x128xf32>
    %146 = arith.mulf %142, %145 : vector<8x128xf32>
    %cst_70 = arith.constant dense<0.000000e+00> : vector<8xf32>
    %147 = vector.multi_reduction <add>, %146, %cst_70 [1] : vector<8x128xf32> to vector<8xf32>
    %148 = vector.shape_cast %147 : vector<8xf32> to vector<8x1xf32>
    %c0_71 = arith.constant 0 : index
    %c0_72 = arith.constant 0 : index
    %149 = vector.load %arg19[%c0_71, %c0_72] : memref<1x1xf32, #tpu.memory_space<vmem>>, vector<1x1xf32>
    %150 = vector.broadcast %149 : vector<1x1xf32> to vector<8x1xf32>
    %151 = arith.addf %148, %150 : vector<8x1xf32>
    %152 = arith.negf %151 : vector<8x1xf32>
    %153 = math.exp %152 : vector<8x1xf32>
    %cst_73 = arith.constant 1.000000e+00 : f32
    %154 = vector.broadcast %cst_73 : f32 to vector<8x1xf32>
    %155 = arith.addf %154, %153 : vector<8x1xf32>
    %156 = arith.divf %154, %155 : vector<8x1xf32>
    %157 = arith.truncf %143 : vector<8x128xf32> to vector<8x128xbf16>
    %c0_74 = arith.constant 0 : index
    %c0_75 = arith.constant 0 : index
    %158 = vector.load %arg20[%c0_74, %c0_75] : memref<128x64xbf16, #tpu.memory_space<vmem>>, vector<128x64xbf16>
    %cst_76 = arith.constant dense<0.000000e+00> : vector<8x64xf32>
    %159 = tpu.matmul %157, %158, %cst_76 {dimension_numbers = #tpu.dot_dimension_numbers<[1], [0], [0], [1], [0, 0, 1, 1], [], []>} : vector<8x128xbf16>, vector<128x64xbf16>, vector<8x64xf32> -> vector<8x64xf32>
    %c0_77 = arith.constant 0 : index
    %c0_78 = arith.constant 0 : index
    %160 = vector.load %arg21[%c0_77, %c0_78] : memref<1x64xf32, #tpu.memory_space<vmem>>, vector<1x64xf32>
    %161 = vector.broadcast %160 : vector<1x64xf32> to vector<8x64xf32>
    %162 = arith.addf %159, %161 : vector<8x64xf32>
    %163 = arith.mulf %162, %162 : vector<8x64xf32>
    %164 = arith.mulf %162, %163 : vector<8x64xf32>
    %cst_79 = arith.constant 4.471500e-02 : f32
    %165 = vector.broadcast %cst_79 : f32 to vector<8x64xf32>
    %166 = arith.mulf %165, %164 : vector<8x64xf32>
    %167 = arith.addf %162, %166 : vector<8x64xf32>
    %cst_80 = arith.constant 0.797884583 : f32
    %168 = vector.broadcast %cst_80 : f32 to vector<8x64xf32>
    %169 = arith.mulf %168, %167 : vector<8x64xf32>
    %170 = math.tanh %169 : vector<8x64xf32>
    %cst_81 = arith.constant 1.000000e+00 : f32
    %171 = vector.broadcast %cst_81 : f32 to vector<8x64xf32>
    %172 = arith.addf %171, %170 : vector<8x64xf32>
    %cst_82 = arith.constant 5.000000e-01 : f32
    %173 = vector.broadcast %cst_82 : f32 to vector<8x64xf32>
    %174 = arith.mulf %173, %172 : vector<8x64xf32>
    %175 = arith.mulf %162, %174 : vector<8x64xf32>
    %176 = arith.truncf %175 : vector<8x64xf32> to vector<8x64xbf16>
    %c0_83 = arith.constant 0 : index
    %c0_84 = arith.constant 0 : index
    %177 = vector.load %arg22[%c0_83, %c0_84] : memref<64x128xbf16, #tpu.memory_space<vmem>>, vector<64x128xbf16>
    %cst_85 = arith.constant dense<0.000000e+00> : vector<8x128xf32>
    %178 = tpu.matmul %176, %177, %cst_85 {dimension_numbers = #tpu.dot_dimension_numbers<[1], [0], [0], [1], [0, 0, 1, 1], [], []>} : vector<8x64xbf16>, vector<64x128xbf16>, vector<8x128xf32> -> vector<8x128xf32>
    %c0_86 = arith.constant 0 : index
    %c0_87 = arith.constant 0 : index
    %179 = vector.load %arg23[%c0_86, %c0_87] : memref<1x128xf32, #tpu.memory_space<vmem>>, vector<1x128xf32>
    %180 = vector.broadcast %179 : vector<1x128xf32> to vector<8x128xf32>
    %181 = arith.addf %178, %180 : vector<8x128xf32>
    %182 = tpu.iota {dimensions = array<i32: 1>} : vector<8x128xi32>
    %c0_i32 = arith.constant 0 : i32
    %183 = vector.broadcast %c0_i32 : i32 to vector<8x128xi32>
    %184 = arith.cmpi eq, %182, %183 : vector<8x128xi32>
    %185 = vector.shape_cast %156 : vector<8x1xf32> to vector<8x1xf32>
    %186 = vector.broadcast %185 : vector<8x1xf32> to vector<8x128xf32>
    %187 = arith.select %184, %186, %181 : vector<8x128xi1>, vector<8x128xf32>
    %c0_88 = arith.constant 0 : index
    %c0_89 = arith.constant 0 : index
    %188 = vector.load %arg25[%c0_88, %c0_89] : memref<8x128xf32, #tpu.memory_space<vmem>>, vector<8x128xf32>
    tpu.vector_store %arg25[%c0_88, %c0_89], %187 {strides = array<i32>} : memref<8x128xf32, #tpu.memory_space<vmem>>, vector<8x128xf32>,
    return
  }
  func.func @transform_0(%arg0: i32) -> (i32, i32) {
    %c0_i32 = arith.constant 0 : i32
    %c0_i32_0 = arith.constant 0 : i32
    return %arg0, %c0_i32 : i32, i32
  }
  func.func @transform_1(%arg0: i32) -> (i32, i32) {
    %c0_i32 = arith.constant 0 : i32
    %c0_i32_0 = arith.constant 0 : i32
    return %arg0, %c0_i32 : i32, i32
  }
  func.func @transform_2(%arg0: i32) -> (i32, i32) {
    %c0_i32 = arith.constant 0 : i32
    %c0_i32_0 = arith.constant 0 : i32
    %c0_i32_1 = arith.constant 0 : i32
    return %c0_i32, %c0_i32_0 : i32, i32
  }
  func.func @transform_3(%arg0: i32) -> (i32, i32) {
    %c0_i32 = arith.constant 0 : i32
    %c0_i32_0 = arith.constant 0 : i32
    %c0_i32_1 = arith.constant 0 : i32
    return %c0_i32, %c0_i32_0 : i32, i32
  }
  func.func @transform_4(%arg0: i32) -> (i32, i32) {
    %c0_i32 = arith.constant 0 : i32
    %c0_i32_0 = arith.constant 0 : i32
    %c0_i32_1 = arith.constant 0 : i32
    return %c0_i32, %c0_i32_0 : i32, i32
  }
  func.func @transform_5(%arg0: i32) -> (i32, i32) {
    %c0_i32 = arith.constant 0 : i32
    %c0_i32_0 = arith.constant 0 : i32
    %c0_i32_1 = arith.constant 0 : i32
    return %c0_i32, %c0_i32_0 : i32, i32
  }
  func.func @transform_6(%arg0: i32) -> (i32, i32) {
    %c0_i32 = arith.constant 0 : i32
    %c0_i32_0 = arith.constant 0 : i32
    %c0_i32_1 = arith.constant 0 : i32
    return %c0_i32, %c0_i32_0 : i32, i32
  }
  func.func @transform_7(%arg0: i32) -> (i32, i32) {
    %c0_i32 = arith.constant 0 : i32
    %c0_i32_0 = arith.constant 0 : i32
    %c0_i32_1 = arith.constant 0 : i32
    return %c0_i32, %c0_i32_0 : i32, i32
  }
  func.func @transform_8(%arg0: i32) -> (i32, i32) {
    %c0_i32 = arith.constant 0 : i32
    %c0_i32_0 = arith.constant 0 : i32
    %c0_i32_1 = arith.constant 0 : i32
    return %c0_i32, %c0_i32_0 : i32, i32
  }
  func.func @transform_9(%arg0: i32) -> (i32, i32) {
    %c0_i32 = arith.constant 0 : i32
    %c0_i32_0 = arith.constant 0 : i32
    %c0_i32_1 = arith.constant 0 : i32
    return %c0_i32, %c0_i32_0 : i32, i32
  }
  func.func @transform_10(%arg0: i32) -> (i32, i32) {
    %c0_i32 = arith.constant 0 : i32
    %c0_i32_0 = arith.constant 0 : i32
    %c0_i32_1 = arith.constant 0 : i32
    return %c0_i32, %c0_i32_0 : i32, i32
  }
  func.func @transform_11(%arg0: i32) -> (i32, i32) {
    %c0_i32 = arith.constant 0 : i32
    %c0_i32_0 = arith.constant 0 : i32
    %c0_i32_1 = arith.constant 0 : i32
    return %c0_i32, %c0_i32_0 : i32, i32
  }
  func.func @transform_12(%arg0: i32) -> (i32, i32) {
    %c0_i32 = arith.constant 0 : i32
    %c0_i32_0 = arith.constant 0 : i32
    %c0_i32_1 = arith.constant 0 : i32
    return %c0_i32, %c0_i32_0 : i32, i32
  }
  func.func @transform_13(%arg0: i32) -> (i32, i32) {
    %c0_i32 = arith.constant 0 : i32
    %c0_i32_0 = arith.constant 0 : i32
    %c0_i32_1 = arith.constant 0 : i32
    return %c0_i32, %c0_i32_0 : i32, i32
  }
  func.func @transform_14(%arg0: i32) -> (i32, i32) {
    %c0_i32 = arith.constant 0 : i32
    %c0_i32_0 = arith.constant 0 : i32
    %c0_i32_1 = arith.constant 0 : i32
    return %c0_i32, %c0_i32_0 : i32, i32
  }
  func.func @transform_15(%arg0: i32) -> (i32, i32) {
    %c0_i32 = arith.constant 0 : i32
    %c0_i32_0 = arith.constant 0 : i32
    %c0_i32_1 = arith.constant 0 : i32
    return %c0_i32, %c0_i32_0 : i32, i32
  }
  func.func @transform_16(%arg0: i32) -> (i32, i32) {
    %c0_i32 = arith.constant 0 : i32
    %c0_i32_0 = arith.constant 0 : i32
    %c0_i32_1 = arith.constant 0 : i32
    return %c0_i32, %c0_i32_0 : i32, i32
  }
  func.func @transform_17(%arg0: i32) -> (i32, i32) {
    %c0_i32 = arith.constant 0 : i32
    %c0_i32_0 = arith.constant 0 : i32
    %c0_i32_1 = arith.constant 0 : i32
    return %c0_i32, %c0_i32_0 : i32, i32
  }
  func.func @transform_18(%arg0: i32) -> (i32, i32) {
    %c0_i32 = arith.constant 0 : i32
    %c0_i32_0 = arith.constant 0 : i32
    %c0_i32_1 = arith.constant 0 : i32
    return %c0_i32, %c0_i32_0 : i32, i32
  }
  func.func @transform_19(%arg0: i32) -> (i32, i32) {
    %c0_i32 = arith.constant 0 : i32
    %c0_i32_0 = arith.constant 0 : i32
    %c0_i32_1 = arith.constant 0 : i32
    return %c0_i32, %c0_i32_0 : i32, i32
  }
  func.func @transform_20(%arg0: i32) -> (i32, i32) {
    %c0_i32 = arith.constant 0 : i32
    %c0_i32_0 = arith.constant 0 : i32
    %c0_i32_1 = arith.constant 0 : i32
    return %c0_i32, %c0_i32_0 : i32, i32
  }
  func.func @transform_21(%arg0: i32) -> (i32, i32) {
    %c0_i32 = arith.constant 0 : i32
    %c0_i32_0 = arith.constant 0 : i32
    %c0_i32_1 = arith.constant 0 : i32
    return %c0_i32, %c0_i32_0 : i32, i32
  }
  func.func @transform_22(%arg0: i32) -> (i32, i32) {
    %c0_i32 = arith.constant 0 : i32
    %c0_i32_0 = arith.constant 0 : i32
    %c0_i32_1 = arith.constant 0 : i32
    return %c0_i32, %c0_i32_0 : i32, i32
  }
  func.func @transform_23(%arg0: i32) -> (i32, i32) {
    %c0_i32 = arith.constant 0 : i32
    %c0_i32_0 = arith.constant 0 : i32
    return %arg0, %c0_i32 : i32, i32
  }
  func.func @transform_24(%arg0: i32) -> (i32, i32) {
    %c0_i32 = arith.constant 0 : i32
    %c0_i32_0 = arith.constant 0 : i32
    return %arg0, %c0_i32 : i32, i32
  }
}

</mosaic_0001>

<llo_original>
// kernel: fwm_dynamics_forward.1
$region0: #{fwm_dynamics_forward.1}
  #allocation0 [shape = 'u32[]', space=smem, size = 0x4, offset = 0x4, fixed_abs, tag = 'smem constant byte address 0x4 - core index']
  #allocation1 [shape = 'u32[144,128]{1,0:T(1,128)}', space=vmem, size = 0x12000, scoped, tag = 'internal scratch']
  #allocation2 [shape = 'f32[1,1]{1,0:T(1,128)S(1)}', space=vmem, size = 0x200, scoped, tag = 'scoped memory for fwm_dynamics_forward.1']
  %s0 = inlined_call_operand.vmem [shape: bf16[8,256], index: 0, kind: input, shape index: {}]
  %s1 = inlined_call_operand.vmem [shape: bf16[8,32], index: 1, kind: input, shape index: {}]
  %s2 = inlined_call_operand.vmem [shape: bf16[32,128], index: 2, kind: input, shape index: {}]
  %s3 = inlined_call_operand.vmem [shape: f32[1,128], index: 3, kind: input, shape index: {}]
  %s4 = inlined_call_operand.vmem [shape: f32[1,128], index: 4, kind: input, shape index: {}]
  %s5 = inlined_call_operand.vmem [shape: f32[1,128], index: 5, kind: input, shape index: {}]
  %s6 = inlined_call_operand.vmem [shape: bf16[256,512], index: 6, kind: input, shape index: {}]
  %s7 = inlined_call_operand.vmem [shape: bf16[128,512], index: 7, kind: input, shape index: {}]
  %s8 = inlined_call_operand.vmem [shape: f32[1,512], index: 8, kind: input, shape index: {}]
  %s9 = inlined_call_operand.vmem [shape: f32[1,512], index: 9, kind: input, shape index: {}]
  %s10 = inlined_call_operand.vmem [shape: f32[1,512], index: 10, kind: input, shape index: {}]
  %s11 = inlined_call_operand.vmem [shape: bf16[512,256], index: 11, kind: input, shape index: {}]
  %s12 = inlined_call_operand.vmem [shape: f32[1,256], index: 12, kind: input, shape index: {}]
  %s13 = inlined_call_operand.vmem [shape: f32[1,256], index: 13, kind: input, shape index: {}]
  %s14 = inlined_call_operand.vmem [shape: f32[1,256], index: 14, kind: input, shape index: {}]
  %s15 = inlined_call_operand.vmem [shape: bf16[256,256], index: 15, kind: input, shape index: {}]
  %s16 = inlined_call_operand.vmem [shape: f32[1,256], index: 16, kind: input, shape index: {}]
  %s17 = inlined_call_operand.vmem [shape: f32[1,128], index: 17, kind: input, shape index: {}]
  %s18 = inlined_call_operand.<no memory space> [shape: f32[1,1], index: 18, kind: input, shape index: {}]
  %s19 = inlined_call_operand.vmem [shape: bf16[128,64], index: 19, kind: input, shape index: {}]
  %s20 = inlined_call_operand.vmem [shape: f32[1,64], index: 20, kind: input, shape index: {}]
  %s21 = inlined_call_operand.vmem [shape: bf16[64,128], index: 21, kind: input, shape index: {}]
  %s22 = inlined_call_operand.vmem [shape: f32[1,128], index: 22, kind: input, shape index: {}]
  %s23 = inlined_call_operand.hbm [shape: f32[8,256], index: 23, kind: output, shape index: {0}]
  %s24 = inlined_call_operand.vmem [shape: f32[8,128], index: 24, kind: output, shape index: {1}]
  %25 = xla_tuple %s23, %s24
  %s26 = sld [smem:[#allocation0]]
  $region110: #{fwm_dynamics_forward.1} parent=0
    _
  %s28 = ssub.s32 1, %s26
  %s29 = scalar_select 0, %s28, %s26
  %v30 = vstv %s18
  %31 = vst [vmem:[#allocation2] sm:$0x1] %v30
  $region1: #{fwm_dynamics_forward.1} parent=0
    #allocation3 [shape = 'u8[8192]{0}', space=vmem, size = 0x2000, scoped, tag = 'output window, operand 0, single buffered']
    #allocation4 [shape = 's32[1]{0}', space=sflag, size = 0x4, scoped, tag = 'scoped memory for fwm_dynamics_forward.1']
    %32 = vsyncpa [#allocation4], 0
    // Predicated region
    $region2: #{fwm_dynamics_forward.1} parent=1 // pred_check
      _
    $region3: #{fwm_dynamics_forward.1} parent=1 // pred_check_branch
      %34 = sbr.rel (0) target = $region5
    $region4: #{fwm_dynamics_forward.1} parent=1 // pred_region
      _
    $region5: #{fwm_dynamics_forward.1} parent=1 // pred_fallthru
      _
    // Predicated region
    $region6: #{fwm_dynamics_forward.1} parent=1 // pred_check
      _
    $region7: #{fwm_dynamics_forward.1} parent=1 // pred_check_branch
      %36 = sbr.rel (0) target = $region9
    $region8: #{fwm_dynamics_forward.1} parent=1 // pred_region
      _
    $region9: #{fwm_dynamics_forward.1} parent=1 // pred_fallthru
      _
    // Predicated region
    $region10: #{fwm_dynamics_forward.1} parent=1 // pred_check
      _
    $region11: #{fwm_dynamics_forward.1} parent=1 // pred_check_branch
      %38 = sbr.rel (0) target = $region13
    $region12: #{fwm_dynamics_forward.1} parent=1 // pred_region
      _
    $region13: #{fwm_dynamics_forward.1} parent=1 // pred_fallthru
      _
    // Predicated region
    $region14: #{fwm_dynamics_forward.1} parent=1 // pred_check
      _
    $region15: #{fwm_dynamics_forward.1} parent=1 // pred_check_branch
      %40 = sbr.rel (0) target = $region17
    $region16: #{fwm_dynamics_forward.1} parent=1 // pred_region
      _
    $region17: #{fwm_dynamics_forward.1} parent=1 // pred_fallthru
      _
    // Predicated region
    $region18: #{fwm_dynamics_forward.1} parent=1 // pred_check
      _
    $region19: #{fwm_dynamics_forward.1} parent=1 // pred_check_branch
      %42 = sbr.rel (0) target = $region21
    $region20: #{fwm_dynamics_forward.1} parent=1 // pred_region
      _
    $region21: #{fwm_dynamics_forward.1} parent=1 // pred_fallthru
      _
    // Predicated region
    $region22: #{fwm_dynamics_forward.1} parent=1 // pred_check
      _
    $region23: #{fwm_dynamics_forward.1} parent=1 // pred_check_branch
      %44 = sbr.rel (0) target = $region25
    $region24: #{fwm_dynamics_forward.1} parent=1 // pred_region
      _
    $region25: #{fwm_dynamics_forward.1} parent=1 // pred_fallthru
      _
    // Predicated region
    $region26: #{fwm_dynamics_forward.1} parent=1 // pred_check
      _
    $region27: #{fwm_dynamics_forward.1} parent=1 // pred_check_branch
      %46 = sbr.rel (0) target = $region29
    $region28: #{fwm_dynamics_forward.1} parent=1 // pred_region
      _
    $region29: #{fwm_dynamics_forward.1} parent=1 // pred_fallthru
      _
    // Predicated region
    $region30: #{fwm_dynamics_forward.1} parent=1 // pred_check
      _
    $region31: #{fwm_dynamics_forward.1} parent=1 // pred_check_branch
      %48 = sbr.rel (0) target = $region33
    $region32: #{fwm_dynamics_forward.1} parent=1 // pred_region
      _
    $region33: #{fwm_dynamics_forward.1} parent=1 // pred_fallthru
      _
    // Predicated region
    $region34: #{fwm_dynamics_forward.1} parent=1 // pred_check
      _
    $region35: #{fwm_dynamics_forward.1} parent=1 // pred_check_branch
      %50 = sbr.rel (0) target = $region37
    $region36: #{fwm_dynamics_forward.1} parent=1 // pred_region
      _
    $region37: #{fwm_dynamics_forward.1} parent=1 // pred_fallthru
      _
    // Predicated region
    $region38: #{fwm_dynamics_forward.1} parent=1 // pred_check
      _
    $region39: #{fwm_dynamics_forward.1} parent=1 // pred_check_branch
      %52 = sbr.rel (0) target = $region41
    $region40: #{fwm_dynamics_forward.1} parent=1 // pred_region
      _
    $region41: #{fwm_dynamics_forward.1} parent=1 // pred_fallthru
      _
    // Predicated region
    $region42: #{fwm_dynamics_forward.1} parent=1 // pred_check
      _
    $region43: #{fwm_dynamics_forward.1} parent=1 // pred_check_branch
      %54 = sbr.rel (0) target = $region45
    $region44: #{fwm_dynamics_forward.1} parent=1 // pred_region
      _
    $region45: #{fwm_dynamics_forward.1} parent=1 // pred_fallthru
      _
    // Predicated region
    $region46: #{fwm_dynamics_forward.1} parent=1 // pred_check
      _
    $region47: #{fwm_dynamics_forward.1} parent=1 // pred_check_branch
      %56 = sbr.rel (0) target = $region49
    $region48: #{fwm_dynamics_forward.1} parent=1 // pred_region
      _
    $region49: #{fwm_dynamics_forward.1} parent=1 // pred_fallthru
      _
    // Predicated region
    $region50: #{fwm_dynamics_forward.1} parent=1 // pred_check
      _
    $region51: #{fwm_dynamics_forward.1} parent=1 // pred_check_branch
      %58 = sbr.rel (0) target = $region53
    $region52: #{fwm_dynamics_forward.1} parent=1 // pred_region
      _
    $region53: #{fwm_dynamics_forward.1} parent=1 // pred_fallthru
      _
    // Predicated region
    $region54: #{fwm_dynamics_forward.1} parent=1 // pred_check
      _
    $region55: #{fwm_dynamics_forward.1} parent=1 // pred_check_branch
      %60 = sbr.rel (0) target = $region57
    $region56: #{fwm_dynamics_forward.1} parent=1 // pred_region
      _
    $region57: #{fwm_dynamics_forward.1} parent=1 // pred_fallthru
      _
    // Predicated region
    $region58: #{fwm_dynamics_forward.1} parent=1 // pred_check
      _
    $region59: #{fwm_dynamics_forward.1} parent=1 // pred_check_branch
      %62 = sbr.rel (0) target = $region61
    $region60: #{fwm_dynamics_forward.1} parent=1 // pred_region
      _
    $region61: #{fwm_dynamics_forward.1} parent=1 // pred_fallthru
      _
    // Predicated region
    $region62: #{fwm_dynamics_forward.1} parent=1 // pred_check
      _
    $region63: #{fwm_dynamics_forward.1} parent=1 // pred_check_branch
      %64 = sbr.rel (0) target = $region65
    $region64: #{fwm_dynamics_forward.1} parent=1 // pred_region
      _
    $region65: #{fwm_dynamics_forward.1} parent=1 // pred_fallthru
      _
    // Predicated region
    $region66: #{fwm_dynamics_forward.1} parent=1 // pred_check
      _
    $region67: #{fwm_dynamics_forward.1} parent=1 // pred_check_branch
      %66 = sbr.rel (0) target = $region69
    $region68: #{fwm_dynamics_forward.1} parent=1 // pred_region
      _
    $region69: #{fwm_dynamics_forward.1} parent=1 // pred_fallthru
      _
    // Predicated region
    $region70: #{fwm_dynamics_forward.1} parent=1 // pred_check
      _
    $region71: #{fwm_dynamics_forward.1} parent=1 // pred_check_branch
      %68 = sbr.rel (0) target = $region73
    $region72: #{fwm_dynamics_forward.1} parent=1 // pred_region
      _
    $region73: #{fwm_dynamics_forward.1} parent=1 // pred_fallthru
      _
    // Predicated region
    $region74: #{fwm_dynamics_forward.1} parent=1 // pred_check
      _
    $region75: #{fwm_dynamics_forward.1} parent=1 // pred_check_branch
      %70 = sbr.rel (0) target = $region77
    $region76: #{fwm_dynamics_forward.1} parent=1 // pred_region
      _
    $region77: #{fwm_dynamics_forward.1} parent=1 // pred_fallthru
      _
    // Predicated region
    $region78: #{fwm_dynamics_forward.1} parent=1 // pred_check
      _
    $region79: #{fwm_dynamics_forward.1} parent=1 // pred_check_branch
      %72 = sbr.rel (0) target = $region81
    $region80: #{fwm_dynamics_forward.1} parent=1 // pred_region
      _
    $region81: #{fwm_dynamics_forward.1} parent=1 // pred_fallthru
      _
    // Predicated region
    $region82: #{fwm_dynamics_forward.1} parent=1 // pred_check
      _
    $region83: #{fwm_dynamics_forward.1} parent=1 // pred_check_branch
      %74 = sbr.rel (0) target = $region85
    $region84: #{fwm_dynamics_forward.1} parent=1 // pred_region
      _
    $region85: #{fwm_dynamics_forward.1} parent=1 // pred_fallthru
      _
    // Predicated region
    $region86: #{fwm_dynamics_forward.1} parent=1 // pred_check
      _
    $region87: #{fwm_dynamics_forward.1} parent=1 // pred_check_branch
      %76 = sbr.rel (0) target = $region89
    $region88: #{fwm_dynamics_forward.1} parent=1 // pred_region
      _
    $region89: #{fwm_dynamics_forward.1} parent=1 // pred_fallthru
      _
    // Predicated region
    $region90: #{fwm_dynamics_forward.1} parent=1 // pred_check
      _
    $region91: #{fwm_dynamics_forward.1} parent=1 // pred_check_branch
      %78 = sbr.rel (0) target = $region93
    $region92: #{fwm_dynamics_forward.1} parent=1 // pred_region
      _
    $region93: #{fwm_dynamics_forward.1} parent=1 // pred_fallthru
      _
    %v80 = vld [vmem:[%s0] sm:$0xff]
    %v81 = vld [vmem:[%s1] sm:$0xf]
    %v82 = vld [vmem:[%s2] sm:$0xf]
    %v83 = vld [vmem:[%s2 + $0x4] sm:$0xf]
    %v84 = vld [vmem:[%s2 + $0x8] sm:$0xf]
    %v85 = vld [vmem:[%s2 + $0xc] sm:$0xf]
    %v86 = vld [vmem:[%s3] sm:$0x1]
    %v88 = vlaneseq
    %v89 = vshrl.u32 %v88, 7
    %v90 = vsub.s32 0, %v89
    %v91 = vrot.slane %v86, %v90
    %v97 = vunpack.c.l.b16 %v82
    %v98 = vunpack.c.l.b16 %v83
    %v99 = vunpack.c.l.b16 %v84
    %v100 = vunpack.c.l.b16 %v85
    %v101 = vpack.c.b16 %v98, %v97
    %v102 = vpack.c.b16 %v100, %v99
    %vm105 = vcmask 261120
    %v107 = vsel %vm105, %v81, 0
    %109 = vmatprep.subr.bf16.mxu0 0
    %110 = vmatpush1.bf16.msra.mxu0 %v101
    %111 = vmatprep.subr.bf16.mxu0 0
    %112 = vmatpush1.bf16.msra.mxu0 %v102
    %113 = vmatprep.subr.bf16.mxu0 0
    %114 = vmatpush1.bf16.msra.mxu0 0
    %115 = vmatprep.subr.bf16.mxu0 0
    %116 = vmatpush1.bf16.msra.mxu0 0
    %117 = vmatprep.subr.bf16.mxu0 0
    %118 = vmatpush1.bf16.msra.mxu0 0
    %119 = vmatprep.subr.bf16.mxu0 0
    %120 = vmatpush1.bf16.msra.mxu0 0
    %121 = vmatprep.subr.bf16.mxu0 0
    %122 = vmatpush1.bf16.msra.mxu0 0
    %123 = vmatprep.subr.bf16.mxu0 0
    %124 = vmatpush1.bf16.msra.mxu0 0
    %125 = vmatprep.subr.bf16.mxu0 0
    %126 = vmatpush1.bf16.msra.mxu0 0
    %127 = vmatprep.subr.bf16.mxu0 0
    %128 = vmatpush1.bf16.msra.mxu0 0
    %129 = vmatprep.subr.bf16.mxu0 0
    %130 = vmatpush1.bf16.msra.mxu0 0
    %131 = vmatprep.subr.bf16.mxu0 0
    %132 = vmatpush1.bf16.msra.mxu0 0
    %133 = vmatprep.subr.bf16.mxu0 0
    %134 = vmatpush1.bf16.msra.mxu0 0
    %135 = vmatprep.subr.bf16.mxu0 0
    %136 = vmatpush1.bf16.msra.mxu0 0
    %137 = vmatprep.subr.bf16.mxu0 0
    %138 = vmatpush1.bf16.msra.mxu0 0
    %139 = vmatprep.subr.bf16.mxu0 0
    %140 = vmatpush1.bf16.msra.mxu0 0
    %141 = vmatprep.mubr.bf16.mxu0 0
    %142 = vmatmul.mubr.bf16.gmra.mrb[0].mxu0 %v107
    %v143 = vpop.f32.mrb[0].mxu0
    %v144 = vadd.f32 %v91, %v143
    %v145 = vpop.f32.mrb[0].mxu0
    %v146 = vpop.f32.mrb[0].mxu0
    %v147 = vpop.f32.mrb[0].mxu0
    %148 = vdwg.mxu0
    %v149 = vld [vmem:[%s4] sm:$0x1]
    %v150 = vld [vmem:[%s5] sm:$0x1]
    %151 = vadd.xlane.f32.xlu0 %v144
    %v152 = vpop.xlane.xlu0 %151
    %v153 = vrcp.pop 128.0
    %v154 = vmul.f32 %v152, %v153
    %v155 = vsub.f32 %v144, %v154
    %v156 = vmul.f32 %v155, %v155
    %157 = vadd.xlane.f32.xlu0 %v156
    %v158 = vpop.xlane.xlu0 %157
    %v159 = vmul.f32 %v158, %v153
    %v160 = vadd.f32 %v159, 1e-05
    %v161 = vrsqrt.pop %v160
    %v162 = vmul.f32 %v155, %v161
    %v164 = vlaneseq
    %v165 = vshrl.u32 %v164, 7
    %v166 = vsub.s32 0, %v165
    %v167 = vrot.slane %v149, %v166
    %v169 = vmul.f32 %v162, %v167
    %v171 = vlaneseq
    %v172 = vshrl.u32 %v171, 7
    %v173 = vsub.s32 0, %v172
    %v174 = vrot.slane %v150, %v173
    %v176 = vadd.f32 %v169, %v174
    %v177 = vmul.f32 %v176, %v176
    %v178 = vmul.f32 %v176, %v177
    %v179 = vmul.f32 %v178, 0.044715
    %v180 = vadd.f32 %v176, %v179
    %v181 = vmul.f32 %v180, 0.7978846
    %v182 = vtanh.pop %v181
    %v183 = vadd.f32 %v182, 1.0
    %v184 = vmul.f32 %v183, 0.5
    %v185 = vmul.f32 %v176, %v184
    %v186 = vld [vmem:[%s6] sm:$0xff]
    %v187 = vld [vmem:[%s6 + $0x8] sm:$0xff]
    %v188 = vld [vmem:[%s6 + $0x10] sm:$0xff]
    %v189 = vld [vmem:[%s6 + $0x18] sm:$0xff]
    %v190 = vld [vmem:[%s6 + $0x20] sm:$0xff]
    %v191 = vld [vmem:[%s6 + $0x28] sm:$0xff]
    %v192 = vld [vmem:[%s6 + $0x30] sm:$0xff]
    %v193 = vld [vmem:[%s6 + $0x38] sm:$0xff]
    %v194 = vld [vmem:[%s6 + $0x40] sm:$0xff]
    %v195 = vld [vmem:[%s6 + $0x48] sm:$0xff]
    %v196 = vld [vmem:[%s6 + $0x50] sm:$0xff]
    %v197 = vld [vmem:[%s6 + $0x58] sm:$0xff]
    %v198 = vld [vmem:[%s6 + $0x60] sm:$0xff]
    %v199 = vld [vmem:[%s6 + $0x68] sm:$0xff]
    %v200 = vld [vmem:[%s6 + $0x70] sm:$0xff]
    %v201 = vld [vmem:[%s6 + $0x78] sm:$0xff]
    %v202 = vld [vmem:[%s6 + $0x80] sm:$0xff]
    %v203 = vld [vmem:[%s6 + $0x88] sm:$0xff]
    %v204 = vld [vmem:[%s6 + $0x90] sm:$0xff]
    %v205 = vld [vmem:[%s6 + $0x98] sm:$0xff]
    %v206 = vld [vmem:[%s6 + $0xa0] sm:$0xff]
    %v207 = vld [vmem:[%s6 + $0xa8] sm:$0xff]
    %v208 = vld [vmem:[%s6 + $0xb0] sm:$0xff]
    %v209 = vld [vmem:[%s6 + $0xb8] sm:$0xff]
    %v210 = vld [vmem:[%s6 + $0xc0] sm:$0xff]
    %v211 = vld [vmem:[%s6 + $0xc8] sm:$0xff]
    %v212 = vld [vmem:[%s6 + $0xd0] sm:$0xff]
    %v213 = vld [vmem:[%s6 + $0xd8] sm:$0xff]
    %v214 = vld [vmem:[%s6 + $0xe0] sm:$0xff]
    %v215 = vld [vmem:[%s6 + $0xe8] sm:$0xff]
    %v216 = vld [vmem:[%s6 + $0xf0] sm:$0xff]
    %v217 = vld [vmem:[%s6 + $0xf8] sm:$0xff]
    %v218 = vld [vmem:[%s6 + $0x100] sm:$0xff]
    %v219 = vld [vmem:[%s6 + $0x108] sm:$0xff]
    %v220 = vld [vmem:[%s6 + $0x110] sm:$0xff]
    %v221 = vld [vmem:[%s6 + $0x118] sm:$0xff]
    %v222 = vld [vmem:[%s6 + $0x120] sm:$0xff]
    %v223 = vld [vmem:[%s6 + $0x128] sm:$0xff]
    %v224 = vld [vmem:[%s6 + $0x130] sm:$0xff]
    %v225 = vld [vmem:[%s6 + $0x138] sm:$0xff]
    %v226 = vld [vmem:[%s6 + $0x140] sm:$0xff]
    %v227 = vld [vmem:[%s6 + $0x148] sm:$0xff]
    %v228 = vld [vmem:[%s6 + $0x150] sm:$0xff]
    %v229 = vld [vmem:[%s6 + $0x158] sm:$0xff]
    %v230 = vld [vmem:[%s6 + $0x160] sm:$0xff]
    %v231 = vld [vmem:[%s6 + $0x168] sm:$0xff]
    %v232 = vld [vmem:[%s6 + $0x170] sm:$0xff]
    %v233 = vld [vmem:[%s6 + $0x178] sm:$0xff]
    %v234 = vld [vmem:[%s6 + $0x180] sm:$0xff]
    %v235 = vld [vmem:[%s6 + $0x188] sm:$0xff]
    %v236 = vld [vmem:[%s6 + $0x190] sm:$0xff]
    %v237 = vld [vmem:[%s6 + $0x198] sm:$0xff]
    %v238 = vld [vmem:[%s6 + $0x1a0] sm:$0xff]
    %v239 = vld [vmem:[%s6 + $0x1a8] sm:$0xff]
    %v240 = vld [vmem:[%s6 + $0x1b0] sm:$0xff]
    %v241 = vld [vmem:[%s6 + $0x1b8] sm:$0xff]
    %v242 = vld [vmem:[%s6 + $0x1c0] sm:$0xff]
    %v243 = vld [vmem:[%s6 + $0x1c8] sm:$0xff]
    %v244 = vld [vmem:[%s6 + $0x1d0] sm:$0xff]
    %v245 = vld [vmem:[%s6 + $0x1d8] sm:$0xff]
    %v246 = vld [vmem:[%s6 + $0x1e0] sm:$0xff]
    %v247 = vld [vmem:[%s6 + $0x1e8] sm:$0xff]
    %v248 = vld [vmem:[%s6 + $0x1f0] sm:$0xff]
    %v249 = vld [vmem:[%s6 + $0x1f8] sm:$0xff]
    %v250 = vpack.c.bf16 %v185, %v185
    %v251 = vld [vmem:[%s7] sm:$0xff]
    %v252 = vld [vmem:[%s7 + $0x8] sm:$0xff]
    %v253 = vld [vmem:[%s7 + $0x10] sm:$0xff]
    %v254 = vld [vmem:[%s7 + $0x18] sm:$0xff]
    %v255 = vld [vmem:[%s7 + $0x20] sm:$0xff]
    %v256 = vld [vmem:[%s7 + $0x28] sm:$0xff]
    %v257 = vld [vmem:[%s7 + $0x30] sm:$0xff]
    %v258 = vld [vmem:[%s7 + $0x38] sm:$0xff]
    %v259 = vld [vmem:[%s7 + $0x40] sm:$0xff]
    %v260 = vld [vmem:[%s7 + $0x48] sm:$0xff]
    %v261 = vld [vmem:[%s7 + $0x50] sm:$0xff]
    %v262 = vld [vmem:[%s7 + $0x58] sm:$0xff]
    %v263 = vld [vmem:[%s7 + $0x60] sm:$0xff]
    %v264 = vld [vmem:[%s7 + $0x68] sm:$0xff]
    %v265 = vld [vmem:[%s7 + $0x70] sm:$0xff]
    %v266 = vld [vmem:[%s7 + $0x78] sm:$0xff]
    %v267 = vld [vmem:[%s7 + $0x80] sm:$0xff]
    %v268 = vld [vmem:[%s7 + $0x88] sm:$0xff]
    %v269 = vld [vmem:[%s7 + $0x90] sm:$0xff]
    %v270 = vld [vmem:[%s7 + $0x98] sm:$0xff]
    %v271 = vld [vmem:[%s7 + $0xa0] sm:$0xff]
    %v272 = vld [vmem:[%s7 + $0xa8] sm:$0xff]
    %v273 = vld [vmem:[%s7 + $0xb0] sm:$0xff]
    %v274 = vld [vmem:[%s7 + $0xb8] sm:$0xff]
    %v275 = vld [vmem:[%s7 + $0xc0] sm:$0xff]
    %v276 = vld [vmem:[%s7 + $0xc8] sm:$0xff]
    %v277 = vld [vmem:[%s7 + $0xd0] sm:$0xff]
    %v278 = vld [vmem:[%s7 + $0xd8] sm:$0xff]
    %v279 = vld [vmem:[%s7 + $0xe0] sm:$0xff]
    %v280 = vld [vmem:[%s7 + $0xe8] sm:$0xff]
    %v281 = vld [vmem:[%s7 + $0xf0] sm:$0xff]
    %v282 = vld [vmem:[%s7 + $0xf8] sm:$0xff]
    %v315 = vunpack.c.l.b16 %v251
    %v316 = vunpack.c.h.b16 %v251
    %v317 = vunpack.c.l.b16 %v252
    %v318 = vunpack.c.h.b16 %v252
    %v319 = vunpack.c.l.b16 %v253
    %v320 = vunpack.c.h.b16 %v253
    %v321 = vunpack.c.l.b16 %v254
    %v322 = vunpack.c.h.b16 %v254
    %v323 = vunpack.c.l.b16 %v255
    %v324 = vunpack.c.h.b16 %v255
    %v325 = vunpack.c.l.b16 %v256
    %v326 = vunpack.c.h.b16 %v256
    %v327 = vunpack.c.l.b16 %v257
    %v328 = vunpack.c.h.b16 %v257
    %v329 = vunpack.c.l.b16 %v258
    %v330 = vunpack.c.h.b16 %v258
    %v331 = vunpack.c.l.b16 %v259
    %v332 = vunpack.c.h.b16 %v259
    %v333 = vunpack.c.l.b16 %v260
    %v334 = vunpack.c.h.b16 %v260
    %v335 = vunpack.c.l.b16 %v261
    %v336 = vunpack.c.h.b16 %v261
    %v337 = vunpack.c.l.b16 %v262
    %v338 = vunpack.c.h.b16 %v262
    %v339 = vunpack.c.l.b16 %v263
    %v340 = vunpack.c.h.b16 %v263
    %v341 = vunpack.c.l.b16 %v264
    %v342 = vunpack.c.h.b16 %v264
    %v343 = vunpack.c.l.b16 %v265
    %v344 = vunpack.c.h.b16 %v265
    %v345 = vunpack.c.l.b16 %v266
    %v346 = vunpack.c.h.b16 %v266
    %v347 = vunpack.c.l.b16 %v267
    %v348 = vunpack.c.h.b16 %v267
    %v349 = vunpack.c.l.b16 %v268
    %v350 = vunpack.c.h.b16 %v268
    %v351 = vunpack.c.l.b16 %v269
    %v352 = vunpack.c.h.b16 %v269
    %v353 = vunpack.c.l.b16 %v270
    %v354 = vunpack.c.h.b16 %v270
    %v355 = vunpack.c.l.b16 %v271
    %v356 = vunpack.c.h.b16 %v271
    %v357 = vunpack.c.l.b16 %v272
    %v358 = vunpack.c.h.b16 %v272
    %v359 = vunpack.c.l.b16 %v273
    %v360 = vunpack.c.h.b16 %v273
    %v361 = vunpack.c.l.b16 %v274
    %v362 = vunpack.c.h.b16 %v274
    %v363 = vunpack.c.l.b16 %v275
    %v364 = vunpack.c.h.b16 %v275
    %v365 = vunpack.c.l.b16 %v276
    %v366 = vunpack.c.h.b16 %v276
    %v367 = vunpack.c.l.b16 %v277
    %v368 = vunpack.c.h.b16 %v277
    %v369 = vunpack.c.l.b16 %v278
    %v370 = vunpack.c.h.b16 %v278
    %v371 = vunpack.c.l.b16 %v279
    %v372 = vunpack.c.h.b16 %v279
    %v373 = vunpack.c.l.b16 %v280
    %v374 = vunpack.c.h.b16 %v280
    %v375 = vunpack.c.l.b16 %v281
    %v376 = vunpack.c.h.b16 %v281
    %v377 = vunpack.c.l.b16 %v282
    %v378 = vunpack.c.h.b16 %v282
    %v379 = vpack.c.b16 %v319, %v315
    %v380 = vpack.c.b16 %v320, %v316
    %v381 = vpack.c.b16 %v321, %v317
    %v382 = vpack.c.b16 %v322, %v318
    %v383 = vpack.c.b16 %v327, %v323
    %v384 = vpack.c.b16 %v328, %v324
    %v385 = vpack.c.b16 %v329, %v325
    %v386 = vpack.c.b16 %v330, %v326
    %v387 = vpack.c.b16 %v335, %v331
    %v388 = vpack.c.b16 %v336, %v332
    %v389 = vpack.c.b16 %v337, %v333
    %v390 = vpack.c.b16 %v338, %v334
    %v391 = vpack.c.b16 %v343, %v339
    %v392 = vpack.c.b16 %v344, %v340
    %v393 = vpack.c.b16 %v345, %v341
    %v394 = vpack.c.b16 %v346, %v342
    %v395 = vpack.c.b16 %v351, %v347
    %v396 = vpack.c.b16 %v352, %v348
    %v397 = vpack.c.b16 %v353, %v349
    %v398 = vpack.c.b16 %v354, %v350
    %v399 = vpack.c.b16 %v359, %v355
    %v400 = vpack.c.b16 %v360, %v356
    %v401 = vpack.c.b16 %v361, %v357
    %v402 = vpack.c.b16 %v362, %v358
    %v403 = vpack.c.b16 %v367, %v363
    %v404 = vpack.c.b16 %v368, %v364
    %v405 = vpack.c.b16 %v369, %v365
    %v406 = vpack.c.b16 %v370, %v366
    %v407 = vpack.c.b16 %v375, %v371
    %v408 = vpack.c.b16 %v376, %v372
    %v409 = vpack.c.b16 %v377, %v373
    %v410 = vpack.c.b16 %v378, %v374
    %443 = vmatprep.subr.bf16.mxu0 %v380
    %444 = vmatpush1.bf16.msra.mxu0 %v379
    %445 = vmatprep.subr.bf16.mxu0 %v384
    %446 = vmatpush1.bf16.msra.mxu0 %v383
    %447 = vmatprep.subr.bf16.mxu0 %v388
    %448 = vmatpush1.bf16.msra.mxu0 %v387
    %449 = vmatprep.subr.bf16.mxu0 %v392
    %450 = vmatpush1.bf16.msra.mxu0 %v391
    %451 = vmatprep.subr.bf16.mxu0 %v396
    %452 = vmatpush1.bf16.msra.mxu0 %v395
    %453 = vmatprep.subr.bf16.mxu0 %v400
    %454 = vmatpush1.bf16.msra.mxu0 %v399
    %455 = vmatprep.subr.bf16.mxu0 %v404
    %456 = vmatpush1.bf16.msra.mxu0 %v403
    %457 = vmatprep.subr.bf16.mxu0 %v408
    %458 = vmatpush1.bf16.msra.mxu0 %v407
    %459 = vmatprep.subr.bf16.mxu0 0
    %460 = vmatpush1.bf16.msra.mxu0 0
    %461 = vmatprep.subr.bf16.mxu0 0
    %462 = vmatpush1.bf16.msra.mxu0 0
    %463 = vmatprep.subr.bf16.mxu0 0
    %464 = vmatpush1.bf16.msra.mxu0 0
    %465 = vmatprep.subr.bf16.mxu0 0
    %466 = vmatpush1.bf16.msra.mxu0 0
    %467 = vmatprep.subr.bf16.mxu0 0
    %468 = vmatpush1.bf16.msra.mxu0 0
    %469 = vmatprep.subr.bf16.mxu0 0
    %470 = vmatpush1.bf16.msra.mxu0 0
    %471 = vmatprep.subr.bf16.mxu0 0
    %472 = vmatpush1.bf16.msra.mxu0 0
    %473 = vmatprep.subr.bf16.mxu0 0
    %474 = vmatpush1.bf16.msra.mxu0 0
    %475 = vmatprep.mubr.bf16.mxu0 0
    %476 = vmatmul.mubr.bf16.gmra.mrb[0].mxu0 %v250
    %v477 = vpop.f32.mrb[0].mxu0
    %v478 = vadd.f32 0.0, %v477
    %v479 = vpop.f32.mrb[0].mxu0
    %v480 = vadd.f32 0.0, %v479
    %v481 = vpop.f32.mrb[0].mxu0
    %v482 = vpop.f32.mrb[0].mxu0
    %483 = vdwg.mxu0
    %484 = vmatprep.subr.bf16.mxu0 %v382
    %485 = vmatpush1.bf16.msra.mxu0 %v381
    %486 = vmatprep.subr.bf16.mxu0 %v386
    %487 = vmatpush1.bf16.msra.mxu0 %v385
    %488 = vmatprep.subr.bf16.mxu0 %v390
    %489 = vmatpush1.bf16.msra.mxu0 %v389
    %490 = vmatprep.subr.bf16.mxu0 %v394
    %491 = vmatpush1.bf16.msra.mxu0 %v393
    %492 = vmatprep.subr.bf16.mxu0 %v398
    %493 = vmatpush1.bf16.msra.mxu0 %v397
    %494 = vmatprep.subr.bf16.mxu0 %v402
    %495 = vmatpush1.bf16.msra.mxu0 %v401
    %496 = vmatprep.subr.bf16.mxu0 %v406
    %497 = vmatpush1.bf16.msra.mxu0 %v405
    %498 = vmatprep.subr.bf16.mxu0 %v410
    %499 = vmatpush1.bf16.msra.mxu0 %v409
    %500 = vmatprep.subr.bf16.mxu0 0
    %501 = vmatpush1.bf16.msra.mxu0 0
    %502 = vmatprep.subr.bf16.mxu0 0
    %503 = vmatpush1.bf16.msra.mxu0 0
    %504 = vmatprep.subr.bf16.mxu0 0
    %505 = vmatpush1.bf16.msra.mxu0 0
    %506 = vmatprep.subr.bf16.mxu0 0
    %507 = vmatpush1.bf16.msra.mxu0 0
    %508 = vmatprep.subr.bf16.mxu0 0
    %509 = vmatpush1.bf16.msra.mxu0 0
    %510 = vmatprep.subr.bf16.mxu0 0
    %511 = vmatpush1.bf16.msra.mxu0 0
    %512 = vmatprep.subr.bf16.mxu0 0
    %513 = vmatpush1.bf16.msra.mxu0 0
    %514 = vmatprep.subr.bf16.mxu0 0
    %515 = vmatpush1.bf16.msra.mxu0 0
    %516 = vmatprep.mubr.bf16.mxu0 0
    %517 = vmatmul.mubr.bf16.gmra.mrb[0].mxu0 %v250
    %v518 = vpop.f32.mrb[0].mxu0
    %v519 = vadd.f32 0.0, %v518
    %v520 = vpop.f32.mrb[0].mxu0
    %v521 = vadd.f32 0.0, %v520
    %v522 = vpop.f32.mrb[0].mxu0
    %v523 = vpop.f32.mrb[0].mxu0
    %524 = vdwg.mxu0
    %v526 = vunpack.c.l.b16 %v80
    %v527 = vunpack.c.h.b16 %v80
    %v528 = vpack.c.b16 %v526, %v526
    %v529 = vpack.c.b16 %v527, %v527
    %v596 = vunpack.c.l.b16 %v186
    %v597 = vunpack.c.h.b16 %v186
    %v598 = vunpack.c.l.b16 %v187
    %v599 = vunpack.c.h.b16 %v187
    %v600 = vunpack.c.l.b16 %v188
    %v601 = vunpack.c.h.b16 %v188
    %v602 = vunpack.c.l.b16 %v189
    %v603 = vunpack.c.h.b16 %v189
    %v604 = vunpack.c.l.b16 %v190
    %v605 = vunpack.c.h.b16 %v190
    %v606 = vunpack.c.l.b16 %v191
    %v607 = vunpack.c.h.b16 %v191
    %v608 = vunpack.c.l.b16 %v192
    %v609 = vunpack.c.h.b16 %v192
    %v610 = vunpack.c.l.b16 %v193
    %v611 = vunpack.c.h.b16 %v193
    %v612 = vunpack.c.l.b16 %v194
    %v613 = vunpack.c.h.b16 %v194
    %v614 = vunpack.c.l.b16 %v195
    %v615 = vunpack.c.h.b16 %v195
    %v616 = vunpack.c.l.b16 %v196
    %v617 = vunpack.c.h.b16 %v196
    %v618 = vunpack.c.l.b16 %v197
    %v619 = vunpack.c.h.b16 %v197
    %v620 = vunpack.c.l.b16 %v198
    %v621 = vunpack.c.h.b16 %v198
    %v622 = vunpack.c.l.b16 %v199
    %v623 = vunpack.c.h.b16 %v199
    %v624 = vunpack.c.l.b16 %v200
    %v625 = vunpack.c.h.b16 %v200
    %v626 = vunpack.c.l.b16 %v201
    %v627 = vunpack.c.h.b16 %v201
    %v628 = vunpack.c.l.b16 %v202
    %v629 = vunpack.c.h.b16 %v202
    %v630 = vunpack.c.l.b16 %v203
    %v631 = vunpack.c.h.b16 %v203
    %v632 = vunpack.c.l.b16 %v204
    %v633 = vunpack.c.h.b16 %v204
    %v634 = vunpack.c.l.b16 %v205
    %v635 = vunpack.c.h.b16 %v205
    %v636 = vunpack.c.l.b16 %v206
    %v637 = vunpack.c.h.b16 %v206
    %v638 = vunpack.c.l.b16 %v207
    %v639 = vunpack.c.h.b16 %v207
    %v640 = vunpack.c.l.b16 %v208
    %v641 = vunpack.c.h.b16 %v208
    %v642 = vunpack.c.l.b16 %v209
    %v643 = vunpack.c.h.b16 %v209
    %v644 = vunpack.c.l.b16 %v210
    %v645 = vunpack.c.h.b16 %v210
    %v646 = vunpack.c.l.b16 %v211
    %v647 = vunpack.c.h.b16 %v211
    %v648 = vunpack.c.l.b16 %v212
    %v649 = vunpack.c.h.b16 %v212
    %v650 = vunpack.c.l.b16 %v213
    %v651 = vunpack.c.h.b16 %v213
    %v652 = vunpack.c.l.b16 %v214
    %v653 = vunpack.c.h.b16 %v214
    %v654 = vunpack.c.l.b16 %v215
    %v655 = vunpack.c.h.b16 %v215
    %v656 = vunpack.c.l.b16 %v216
    %v657 = vunpack.c.h.b16 %v216
    %v658 = vunpack.c.l.b16 %v217
    %v659 = vunpack.c.h.b16 %v217
    %v660 = vunpack.c.l.b16 %v218
    %v661 = vunpack.c.h.b16 %v218
    %v662 = vunpack.c.l.b16 %v219
    %v663 = vunpack.c.h.b16 %v219
    %v664 = vunpack.c.l.b16 %v220
    %v665 = vunpack.c.h.b16 %v220
    %v666 = vunpack.c.l.b16 %v221
    %v667 = vunpack.c.h.b16 %v221
    %v668 = vunpack.c.l.b16 %v222
    %v669 = vunpack.c.h.b16 %v222
    %v670 = vunpack.c.l.b16 %v223
    %v671 = vunpack.c.h.b16 %v223
    %v672 = vunpack.c.l.b16 %v224
    %v673 = vunpack.c.h.b16 %v224
    %v674 = vunpack.c.l.b16 %v225
    %v675 = vunpack.c.h.b16 %v225
    %v676 = vunpack.c.l.b16 %v226
    %v677 = vunpack.c.h.b16 %v226
    %v678 = vunpack.c.l.b16 %v227
    %v679 = vunpack.c.h.b16 %v227
    %v680 = vunpack.c.l.b16 %v228
    %v681 = vunpack.c.h.b16 %v228
    %v682 = vunpack.c.l.b16 %v229
    %v683 = vunpack.c.h.b16 %v229
    %v684 = vunpack.c.l.b16 %v230
    %v685 = vunpack.c.h.b16 %v230
    %v686 = vunpack.c.l.b16 %v231
    %v687 = vunpack.c.h.b16 %v231
    %v688 = vunpack.c.l.b16 %v232
    %v689 = vunpack.c.h.b16 %v232
    %v690 = vunpack.c.l.b16 %v233
    %v691 = vunpack.c.h.b16 %v233
    %v692 = vunpack.c.l.b16 %v234
    %v693 = vunpack.c.h.b16 %v234
    %v694 = vunpack.c.l.b16 %v235
    %v695 = vunpack.c.h.b16 %v235
    %v696 = vunpack.c.l.b16 %v236
    %v697 = vunpack.c.h.b16 %v236
    %v698 = vunpack.c.l.b16 %v237
    %v699 = vunpack.c.h.b16 %v237
    %v700 = vunpack.c.l.b16 %v238
    %v701 = vunpack.c.h.b16 %v238
    %v702 = vunpack.c.l.b16 %v239
    %v703 = vunpack.c.h.b16 %v239
    %v704 = vunpack.c.l.b16 %v240
    %v705 = vunpack.c.h.b16 %v240
    %v706 = vunpack.c.l.b16 %v241
    %v707 = vunpack.c.h.b16 %v241
    %v708 = vunpack.c.l.b16 %v242
    %v709 = vunpack.c.h.b16 %v242
    %v710 = vunpack.c.l.b16 %v243
    %v711 = vunpack.c.h.b16 %v243
    %v712 = vunpack.c.l.b16 %v244
    %v713 = vunpack.c.h.b16 %v244
    %v714 = vunpack.c.l.b16 %v245
    %v715 = vunpack.c.h.b16 %v245
    %v716 = vunpack.c.l.b16 %v246
    %v717 = vunpack.c.h.b16 %v246
    %v718 = vunpack.c.l.b16 %v247
    %v719 = vunpack.c.h.b16 %v247
    %v720 = vunpack.c.l.b16 %v248
    %v721 = vunpack.c.h.b16 %v248
    %v722 = vunpack.c.l.b16 %v249
    %v723 = vunpack.c.h.b16 %v249
    %v724 = vpack.c.b16 %v600, %v596
    %v725 = vpack.c.b16 %v601, %v597
    %v726 = vpack.c.b16 %v602, %v598
    %v727 = vpack.c.b16 %v603, %v599
    %v728 = vpack.c.b16 %v608, %v604
    %v729 = vpack.c.b16 %v609, %v605
    %v730 = vpack.c.b16 %v610, %v606
    %v731 = vpack.c.b16 %v611, %v607
    %v732 = vpack.c.b16 %v616, %v612
    %v733 = vpack.c.b16 %v617, %v613
    %v734 = vpack.c.b16 %v618, %v614
    %v735 = vpack.c.b16 %v619, %v615
    %v736 = vpack.c.b16 %v624, %v620
    %v737 = vpack.c.b16 %v625, %v621
    %v738 = vpack.c.b16 %v626, %v622
    %v739 = vpack.c.b16 %v627, %v623
    %v740 = vpack.c.b16 %v632, %v628
    %v741 = vpack.c.b16 %v633, %v629
    %v742 = vpack.c.b16 %v634, %v630
    %v743 = vpack.c.b16 %v635, %v631
    %v744 = vpack.c.b16 %v640, %v636
    %v745 = vpack.c.b16 %v641, %v637
    %v746 = vpack.c.b16 %v642, %v638
    %v747 = vpack.c.b16 %v643, %v639
    %v748 = vpack.c.b16 %v648, %v644
    %v749 = vpack.c.b16 %v649, %v645
    %v750 = vpack.c.b16 %v650, %v646
    %v751 = vpack.c.b16 %v651, %v647
    %v752 = vpack.c.b16 %v656, %v652
    %v753 = vpack.c.b16 %v657, %v653
    %v754 = vpack.c.b16 %v658, %v654
    %v755 = vpack.c.b16 %v659, %v655
    %v756 = vpack.c.b16 %v664, %v660
    %v757 = vpack.c.b16 %v665, %v661
    %v758 = vpack.c.b16 %v666, %v662
    %v759 = vpack.c.b16 %v667, %v663
    %v760 = vpack.c.b16 %v672, %v668
    %v761 = vpack.c.b16 %v673, %v669
    %v762 = vpack.c.b16 %v674, %v670
    %v763 = vpack.c.b16 %v675, %v671
    %v764 = vpack.c.b16 %v680, %v676
    %v765 = vpack.c.b16 %v681, %v677
    %v766 = vpack.c.b16 %v682, %v678
    %v767 = vpack.c.b16 %v683, %v679
    %v768 = vpack.c.b16 %v688, %v684
    %v769 = vpack.c.b16 %v689, %v685
    %v770 = vpack.c.b16 %v690, %v686
    %v771 = vpack.c.b16 %v691, %v687
    %v772 = vpack.c.b16 %v696, %v692
    %v773 = vpack.c.b16 %v697, %v693
    %v774 = vpack.c.b16 %v698, %v694
    %v775 = vpack.c.b16 %v699, %v695
    %v776 = vpack.c.b16 %v704, %v700
    %v777 = vpack.c.b16 %v705, %v701
    %v778 = vpack.c.b16 %v706, %v702
    %v779 = vpack.c.b16 %v707, %v703
    %v780 = vpack.c.b16 %v712, %v708
    %v781 = vpack.c.b16 %v713, %v709
    %v782 = vpack.c.b16 %v714, %v710
    %v783 = vpack.c.b16 %v715, %v711
    %v784 = vpack.c.b16 %v720, %v716
    %v785 = vpack.c.b16 %v721, %v717
    %v786 = vpack.c.b16 %v722, %v718
    %v787 = vpack.c.b16 %v723, %v719
    %852 = vmatprep.subr.bf16.mxu0 %v725
    %853 = vmatpush1.bf16.msra.mxu0 %v724
    %854 = vmatprep.subr.bf16.mxu0 %v729
    %855 = vmatpush1.bf16.msra.mxu0 %v728
    %856 = vmatprep.subr.bf16.mxu0 %v733
    %857 = vmatpush1.bf16.msra.mxu0 %v732
    %858 = vmatprep.subr.bf16.mxu0 %v737
    %859 = vmatpush1.bf16.msra.mxu0 %v736
    %860 = vmatprep.subr.bf16.mxu0 %v741
    %861 = vmatpush1.bf16.msra.mxu0 %v740
    %862 = vmatprep.subr.bf16.mxu0 %v745
    %863 = vmatpush1.bf16.msra.mxu0 %v744
    %864 = vmatprep.subr.bf16.mxu0 %v749
    %865 = vmatpush1.bf16.msra.mxu0 %v748
    %866 = vmatprep.subr.bf16.mxu0 %v753
    %867 = vmatpush1.bf16.msra.mxu0 %v752
    %868 = vmatprep.subr.bf16.mxu0 %v757
    %869 = vmatpush1.bf16.msra.mxu0 %v756
    %870 = vmatprep.subr.bf16.mxu0 %v761
    %871 = vmatpush1.bf16.msra.mxu0 %v760
    %872 = vmatprep.subr.bf16.mxu0 %v765
    %873 = vmatpush1.bf16.msra.mxu0 %v764
    %874 = vmatprep.subr.bf16.mxu0 %v769
    %875 = vmatpush1.bf16.msra.mxu0 %v768
    %876 = vmatprep.subr.bf16.mxu0 %v773
    %877 = vmatpush1.bf16.msra.mxu0 %v772
    %878 = vmatprep.subr.bf16.mxu0 %v777
    %879 = vmatpush1.bf16.msra.mxu0 %v776
    %880 = vmatprep.subr.bf16.mxu0 %v781
    %881 = vmatpush1.bf16.msra.mxu0 %v780
    %882 = vmatprep.subr.bf16.mxu0 %v785
    %883 = vmatpush1.bf16.msra.mxu0 %v784
    %884 = vmatprep.mubr.bf16.mxu0 %v529
    %885 = vmatmul.mubr.bf16.gmra.mrb[0].mxu0 %v528
    %v886 = vpop.f32.mrb[0].mxu0
    %v887 = vadd.f32 %v478, %v886
    %v888 = vpop.f32.mrb[0].mxu0
    %v889 = vadd.f32 %v480, %v888
    %v890 = vpop.f32.mrb[0].mxu0
    %v891 = vpop.f32.mrb[0].mxu0
    %892 = vdwg.mxu0
    %893 = vmatprep.subr.bf16.mxu0 %v727
    %894 = vmatpush1.bf16.msra.mxu0 %v726
    %895 = vmatprep.subr.bf16.mxu0 %v731
    %896 = vmatpush1.bf16.msra.mxu0 %v730
    %897 = vmatprep.subr.bf16.mxu0 %v735
    %898 = vmatpush1.bf16.msra.mxu0 %v734
    %899 = vmatprep.subr.bf16.mxu0 %v739
    %900 = vmatpush1.bf16.msra.mxu0 %v738
    %901 = vmatprep.subr.bf16.mxu0 %v743
    %902 = vmatpush1.bf16.msra.mxu0 %v742
    %903 = vmatprep.subr.bf16.mxu0 %v747
    %904 = vmatpush1.bf16.msra.mxu0 %v746
    %905 = vmatprep.subr.bf16.mxu0 %v751
    %906 = vmatpush1.bf16.msra.mxu0 %v750
    %907 = vmatprep.subr.bf16.mxu0 %v755
    %908 = vmatpush1.bf16.msra.mxu0 %v754
    %909 = vmatprep.subr.bf16.mxu0 %v759
    %910 = vmatpush1.bf16.msra.mxu0 %v758
    %911 = vmatprep.subr.bf16.mxu0 %v763
    %912 = vmatpush1.bf16.msra.mxu0 %v762
    %913 = vmatprep.subr.bf16.mxu0 %v767
    %914 = vmatpush1.bf16.msra.mxu0 %v766
    %915 = vmatprep.subr.bf16.mxu0 %v771
    %916 = vmatpush1.bf16.msra.mxu0 %v770
    %917 = vmatprep.subr.bf16.mxu0 %v775
    %918 = vmatpush1.bf16.msra.mxu0 %v774
    %919 = vmatprep.subr.bf16.mxu0 %v779
    %920 = vmatpush1.bf16.msra.mxu0 %v778
    %921 = vmatprep.subr.bf16.mxu0 %v783
    %922 = vmatpush1.bf16.msra.mxu0 %v782
    %923 = vmatprep.subr.bf16.mxu0 %v787
    %924 = vmatpush1.bf16.msra.mxu0 %v786
    %925 = vmatprep.mubr.bf16.mxu0 %v529
    %926 = vmatmul.mubr.bf16.gmra.mrb[0].mxu0 %v528
    %v927 = vpop.f32.mrb[0].mxu0
    %v928 = vadd.f32 %v519, %v927
    %v929 = vpop.f32.mrb[0].mxu0
    %v930 = vadd.f32 %v521, %v929
    %v931 = vpop.f32.mrb[0].mxu0
    %v932 = vpop.f32.mrb[0].mxu0
    %933 = vdwg.mxu0
    %v934 = vld [vmem:[%s8] sm:$0xf]
    %v936 = vlaneseq
    %v937 = vshrl.u32 %v936, 7
    %v938 = vsub.s32 0, %v937
    %v939 = vrot.slane %v934, %v938
    %v940 = vlaneseq
    %v941 = vshrl.u32 %v940, 7
    %v942 = vsub.s32 1, %v941
    %v943 = vrot.slane %v934, %v942
    %v944 = vlaneseq
    %v945 = vshrl.u32 %v944, 7
    %v946 = vsub.s32 2, %v945
    %v947 = vrot.slane %v934, %v946
    %v948 = vlaneseq
    %v949 = vshrl.u32 %v948, 7
    %v950 = vsub.s32 3, %v949
    %v951 = vrot.slane %v934, %v950
    %v956 = vadd.f32 %v887, %v939
    %v957 = vadd.f32 %v889, %v943
    %v958 = vadd.f32 %v928, %v947
    %v959 = vadd.f32 %v930, %v951
    %v960 = vld [vmem:[%s9] sm:$0xf]
    %v961 = vld [vmem:[%s10] sm:$0xf]
    %v962 = vadd.f32 %v956, %v957
    %v963 = vadd.f32 %v962, %v958
    %v964 = vadd.f32 %v963, %v959
    %965 = vadd.xlane.f32.xlu0 %v964
    %v966 = vpop.xlane.xlu0 %965
    %v967 = vrcp.pop 512.0
    %v968 = vmul.f32 %v966, %v967
    %v969 = vsub.f32 %v956, %v968
    %v970 = vsub.f32 %v957, %v968
    %v971 = vsub.f32 %v958, %v968
    %v972 = vsub.f32 %v959, %v968
    %v973 = vmul.f32 %v969, %v969
    %v974 = vmul.f32 %v970, %v970
    %v975 = vmul.f32 %v971, %v971
    %v976 = vmul.f32 %v972, %v972
    %v977 = vadd.f32 %v973, %v974
    %v978 = vadd.f32 %v977, %v975
    %v979 = vadd.f32 %v978, %v976
    %980 = vadd.xlane.f32.xlu0 %v979
    %v981 = vpop.xlane.xlu0 %980
    %v982 = vmul.f32 %v981, %v967
    %v983 = vadd.f32 %v982, 1e-05
    %v984 = vrsqrt.pop %v983
    %v985 = vmul.f32 %v969, %v984
    %v986 = vmul.f32 %v970, %v984
    %v987 = vmul.f32 %v971, %v984
    %v988 = vmul.f32 %v972, %v984
    %v990 = vlaneseq
    %v991 = vshrl.u32 %v990, 7
    %v992 = vsub.s32 0, %v991
    %v993 = vrot.slane %v960, %v992
    %v994 = vlaneseq
    %v995 = vshrl.u32 %v994, 7
    %v996 = vsub.s32 1, %v995
    %v997 = vrot.slane %v960, %v996
    %v998 = vlaneseq
    %v999 = vshrl.u32 %v998, 7
    %v1000 = vsub.s32 2, %v999
    %v1001 = vrot.slane %v960, %v1000
    %v1002 = vlaneseq
    %v1003 = vshrl.u32 %v1002, 7
    %v1004 = vsub.s32 3, %v1003
    %v1005 = vrot.slane %v960, %v1004
    %v1010 = vmul.f32 %v985, %v993
    %v1011 = vmul.f32 %v986, %v997
    %v1012 = vmul.f32 %v987, %v1001
    %v1013 = vmul.f32 %v988, %v1005
    %v1015 = vlaneseq
    %v1016 = vshrl.u32 %v1015, 7
    %v1017 = vsub.s32 0, %v1016
    %v1018 = vrot.slane %v961, %v1017
    %v1019 = vlaneseq
    %v1020 = vshrl.u32 %v1019, 7
    %v1021 = vsub.s32 1, %v1020
    %v1022 = vrot.slane %v961, %v1021
    %v1023 = vlaneseq
    %v1024 = vshrl.u32 %v1023, 7
    %v1025 = vsub.s32 2, %v1024
    %v1026 = vrot.slane %v961, %v1025
    %v1027 = vlaneseq
    %v1028 = vshrl.u32 %v1027, 7
    %v1029 = vsub.s32 3, %v1028
    %v1030 = vrot.slane %v961, %v1029
    %v1035 = vadd.f32 %v1010, %v1018
    %v1036 = vadd.f32 %v1011, %v1022
    %v1037 = vadd.f32 %v1012, %v1026
    %v1038 = vadd.f32 %v1013, %v1030
    %v1039 = vmul.f32 %v1035, %v1035
    %v1040 = vmul.f32 %v1036, %v1036
    %v1041 = vmul.f32 %v1037, %v1037
    %v1042 = vmul.f32 %v1038, %v1038
    %v1043 = vmul.f32 %v1035, %v1039
    %v1044 = vmul.f32 %v1036, %v1040
    %v1045 = vmul.f32 %v1037, %v1041
    %v1046 = vmul.f32 %v1038, %v1042
    %v1047 = vmul.f32 %v1043, 0.044715
    %v1048 = vmul.f32 %v1044, 0.044715
    %v1049 = vmul.f32 %v1045, 0.044715
    %v1050 = vmul.f32 %v1046, 0.044715
    %v1051 = vadd.f32 %v1035, %v1047
    %v1052 = vadd.f32 %v1036, %v1048
    %v1053 = vadd.f32 %v1037, %v1049
    %v1054 = vadd.f32 %v1038, %v1050
    %v1055 = vmul.f32 %v1051, 0.7978846
    %v1056 = vmul.f32 %v1052, 0.7978846
    %v1057 = vmul.f32 %v1053, 0.7978846
    %v1058 = vmul.f32 %v1054, 0.7978846
    %v1059 = vtanh.pop %v1055
    %v1060 = vtanh.pop %v1056
    %v1061 = vtanh.pop %v1057
    %v1062 = vtanh.pop %v1058
    %v1063 = vadd.f32 %v1059, 1.0
    %v1064 = vadd.f32 %v1060, 1.0
    %v1065 = vadd.f32 %v1061, 1.0
    %v1066 = vadd.f32 %v1062, 1.0
    %v1067 = vmul.f32 %v1063, 0.5
    %v1068 = vmul.f32 %v1064, 0.5
    %v1069 = vmul.f32 %v1065, 0.5
    %v1070 = vmul.f32 %v1066, 0.5
    %v1071 = vmul.f32 %v1035, %v1067
    %v1072 = vmul.f32 %v1036, %v1068
    %v1073 = vmul.f32 %v1037, %v1069
    %v1074 = vmul.f32 %v1038, %v1070
    %v1075 = vpack.c.bf16 %v1071, %v1071
    %v1076 = vpack.c.bf16 %v1072, %v1072
    %v1077 = vpack.c.bf16 %v1073, %v1073
    %v1078 = vpack.c.bf16 %v1074, %v1074
    %v1079 = vld [vmem:[%s11] sm:$0xff]
    %v1080 = vld [vmem:[%s11 + $0x8] sm:$0xff]
    %v1081 = vld [vmem:[%s11 + $0x10] sm:$0xff]
    %v1082 = vld [vmem:[%s11 + $0x18] sm:$0xff]
    %v1083 = vld [vmem:[%s11 + $0x20] sm:$0xff]
    %v1084 = vld [vmem:[%s11 + $0x28] sm:$0xff]
    %v1085 = vld [vmem:[%s11 + $0x30] sm:$0xff]
    %v1086 = vld [vmem:[%s11 + $0x38] sm:$0xff]
    %v1087 = vld [vmem:[%s11 + $0x40] sm:$0xff]
    %v1088 = vld [vmem:[%s11 + $0x48] sm:$0xff]
    %v1089 = vld [vmem:[%s11 + $0x50] sm:$0xff]
    %v1090 = vld [vmem:[%s11 + $0x58] sm:$0xff]
    %v1091 = vld [vmem:[%s11 + $0x60] sm:$0xff]
    %v1092 = vld [vmem:[%s11 + $0x68] sm:$0xff]
    %v1093 = vld [vmem:[%s11 + $0x70] sm:$0xff]
    %v1094 = vld [vmem:[%s11 + $0x78] sm:$0xff]
    %v1095 = vld [vmem:[%s11 + $0x80] sm:$0xff]
    %v1096 = vld [vmem:[%s11 + $0x88] sm:$0xff]
    %v1097 = vld [vmem:[%s11 + $0x90] sm:$0xff]
    %v1098 = vld [vmem:[%s11 + $0x98] sm:$0xff]
    %v1099 = vld [vmem:[%s11 + $0xa0] sm:$0xff]
    %v1100 = vld [vmem:[%s11 + $0xa8] sm:$0xff]
    %v1101 = vld [vmem:[%s11 + $0xb0] sm:$0xff]
    %v1102 = vld [vmem:[%s11 + $0xb8] sm:$0xff]
    %v1103 = vld [vmem:[%s11 + $0xc0] sm:$0xff]
    %v1104 = vld [vmem:[%s11 + $0xc8] sm:$0xff]
    %v1105 = vld [vmem:[%s11 + $0xd0] sm:$0xff]
    %v1106 = vld [vmem:[%s11 + $0xd8] sm:$0xff]
    %v1107 = vld [vmem:[%s11 + $0xe0] sm:$0xff]
    %v1108 = vld [vmem:[%s11 + $0xe8] sm:$0xff]
    %v1109 = vld [vmem:[%s11 + $0xf0] sm:$0xff]
    %v1110 = vld [vmem:[%s11 + $0xf8] sm:$0xff]
    %v1111 = vld [vmem:[%s11 + $0x100] sm:$0xff]
    %v1112 = vld [vmem:[%s11 + $0x108] sm:$0xff]
    %v1113 = vld [vmem:[%s11 + $0x110] sm:$0xff]
    %v1114 = vld [vmem:[%s11 + $0x118] sm:$0xff]
    %v1115 = vld [vmem:[%s11 + $0x120] sm:$0xff]
    %v1116 = vld [vmem:[%s11 + $0x128] sm:$0xff]
    %v1117 = vld [vmem:[%s11 + $0x130] sm:$0xff]
    %v1118 = vld [vmem:[%s11 + $0x138] sm:$0xff]
    %v1119 = vld [vmem:[%s11 + $0x140] sm:$0xff]
    %v1120 = vld [vmem:[%s11 + $0x148] sm:$0xff]
    %v1121 = vld [vmem:[%s11 + $0x150] sm:$0xff]
    %v1122 = vld [vmem:[%s11 + $0x158] sm:$0xff]
    %v1123 = vld [vmem:[%s11 + $0x160] sm:$0xff]
    %v1124 = vld [vmem:[%s11 + $0x168] sm:$0xff]
    %v1125 = vld [vmem:[%s11 + $0x170] sm:$0xff]
    %v1126 = vld [vmem:[%s11 + $0x178] sm:$0xff]
    %v1127 = vld [vmem:[%s11 + $0x180] sm:$0xff]
    %v1128 = vld [vmem:[%s11 + $0x188] sm:$0xff]
    %v1129 = vld [vmem:[%s11 + $0x190] sm:$0xff]
    %v1130 = vld [vmem:[%s11 + $0x198] sm:$0xff]
    %v1131 = vld [vmem:[%s11 + $0x1a0] sm:$0xff]
    %v1132 = vld [vmem:[%s11 + $0x1a8] sm:$0xff]
    %v1133 = vld [vmem:[%s11 + $0x1b0] sm:$0xff]
    %v1134 = vld [vmem:[%s11 + $0x1b8] sm:$0xff]
    %v1135 = vld [vmem:[%s11 + $0x1c0] sm:$0xff]
    %v1136 = vld [vmem:[%s11 + $0x1c8] sm:$0xff]
    %v1137 = vld [vmem:[%s11 + $0x1d0] sm:$0xff]
    %v1138 = vld [vmem:[%s11 + $0x1d8] sm:$0xff]
    %v1139 = vld [vmem:[%s11 + $0x1e0] sm:$0xff]
    %v1140 = vld [vmem:[%s11 + $0x1e8] sm:$0xff]
    %v1141 = vld [vmem:[%s11 + $0x1f0] sm:$0xff]
    %v1142 = vld [vmem:[%s11 + $0x1f8] sm:$0xff]
    %v1143 = vld [vmem:[%s12] sm:$0x3]
    %v1145 = vlaneseq
    %v1146 = vshrl.u32 %v1145, 7
    %v1147 = vsub.s32 0, %v1146
    %v1148 = vrot.slane %v1143, %v1147
    %v1149 = vlaneseq
    %v1150 = vshrl.u32 %v1149, 7
    %v1151 = vsub.s32 1, %v1150
    %v1152 = vrot.slane %v1143, %v1151
    %v1219 = vunpack.c.l.b16 %v1079
    %v1220 = vunpack.c.h.b16 %v1079
    %v1221 = vunpack.c.l.b16 %v1080
    %v1222 = vunpack.c.h.b16 %v1080
    %v1223 = vunpack.c.l.b16 %v1081
    %v1224 = vunpack.c.h.b16 %v1081
    %v1225 = vunpack.c.l.b16 %v1082
    %v1226 = vunpack.c.h.b16 %v1082
    %v1227 = vunpack.c.l.b16 %v1083
    %v1228 = vunpack.c.h.b16 %v1083
    %v1229 = vunpack.c.l.b16 %v1084
    %v1230 = vunpack.c.h.b16 %v1084
    %v1231 = vunpack.c.l.b16 %v1085
    %v1232 = vunpack.c.h.b16 %v1085
    %v1233 = vunpack.c.l.b16 %v1086
    %v1234 = vunpack.c.h.b16 %v1086
    %v1235 = vunpack.c.l.b16 %v1087
    %v1236 = vunpack.c.h.b16 %v1087
    %v1237 = vunpack.c.l.b16 %v1088
    %v1238 = vunpack.c.h.b16 %v1088
    %v1239 = vunpack.c.l.b16 %v1089
    %v1240 = vunpack.c.h.b16 %v1089
    %v1241 = vunpack.c.l.b16 %v1090
    %v1242 = vunpack.c.h.b16 %v1090
    %v1243 = vunpack.c.l.b16 %v1091
    %v1244 = vunpack.c.h.b16 %v1091
    %v1245 = vunpack.c.l.b16 %v1092
    %v1246 = vunpack.c.h.b16 %v1092
    %v1247 = vunpack.c.l.b16 %v1093
    %v1248 = vunpack.c.h.b16 %v1093
    %v1249 = vunpack.c.l.b16 %v1094
    %v1250 = vunpack.c.h.b16 %v1094
    %v1251 = vunpack.c.l.b16 %v1095
    %v1252 = vunpack.c.h.b16 %v1095
    %v1253 = vunpack.c.l.b16 %v1096
    %v1254 = vunpack.c.h.b16 %v1096
    %v1255 = vunpack.c.l.b16 %v1097
    %v1256 = vunpack.c.h.b16 %v1097
    %v1257 = vunpack.c.l.b16 %v1098
    %v1258 = vunpack.c.h.b16 %v1098
    %v1259 = vunpack.c.l.b16 %v1099
    %v1260 = vunpack.c.h.b16 %v1099
    %v1261 = vunpack.c.l.b16 %v1100
    %v1262 = vunpack.c.h.b16 %v1100
    %v1263 = vunpack.c.l.b16 %v1101
    %v1264 = vunpack.c.h.b16 %v1101
    %v1265 = vunpack.c.l.b16 %v1102
    %v1266 = vunpack.c.h.b16 %v1102
    %v1267 = vunpack.c.l.b16 %v1103
    %v1268 = vunpack.c.h.b16 %v1103
    %v1269 = vunpack.c.l.b16 %v1104
    %v1270 = vunpack.c.h.b16 %v1104
    %v1271 = vunpack.c.l.b16 %v1105
    %v1272 = vunpack.c.h.b16 %v1105
    %v1273 = vunpack.c.l.b16 %v1106
    %v1274 = vunpack.c.h.b16 %v1106
    %v1275 = vunpack.c.l.b16 %v1107
    %v1276 = vunpack.c.h.b16 %v1107
    %v1277 = vunpack.c.l.b16 %v1108
    %v1278 = vunpack.c.h.b16 %v1108
    %v1279 = vunpack.c.l.b16 %v1109
    %v1280 = vunpack.c.h.b16 %v1109
    %v1281 = vunpack.c.l.b16 %v1110
    %v1282 = vunpack.c.h.b16 %v1110
    %v1283 = vunpack.c.l.b16 %v1111
    %v1284 = vunpack.c.h.b16 %v1111
    %v1285 = vunpack.c.l.b16 %v1112
    %v1286 = vunpack.c.h.b16 %v1112
    %v1287 = vunpack.c.l.b16 %v1113
    %v1288 = vunpack.c.h.b16 %v1113
    %v1289 = vunpack.c.l.b16 %v1114
    %v1290 = vunpack.c.h.b16 %v1114
    %v1291 = vunpack.c.l.b16 %v1115
    %v1292 = vunpack.c.h.b16 %v1115
    %v1293 = vunpack.c.l.b16 %v1116
    %v1294 = vunpack.c.h.b16 %v1116
    %v1295 = vunpack.c.l.b16 %v1117
    %v1296 = vunpack.c.h.b16 %v1117
    %v1297 = vunpack.c.l.b16 %v1118
    %v1298 = vunpack.c.h.b16 %v1118
    %v1299 = vunpack.c.l.b16 %v1119
    %v1300 = vunpack.c.h.b16 %v1119
    %v1301 = vunpack.c.l.b16 %v1120
    %v1302 = vunpack.c.h.b16 %v1120
    %v1303 = vunpack.c.l.b16 %v1121
    %v1304 = vunpack.c.h.b16 %v1121
    %v1305 = vunpack.c.l.b16 %v1122
    %v1306 = vunpack.c.h.b16 %v1122
    %v1307 = vunpack.c.l.b16 %v1123
    %v1308 = vunpack.c.h.b16 %v1123
    %v1309 = vunpack.c.l.b16 %v1124
    %v1310 = vunpack.c.h.b16 %v1124
    %v1311 = vunpack.c.l.b16 %v1125
    %v1312 = vunpack.c.h.b16 %v1125
    %v1313 = vunpack.c.l.b16 %v1126
    %v1314 = vunpack.c.h.b16 %v1126
    %v1315 = vunpack.c.l.b16 %v1127
    %v1316 = vunpack.c.h.b16 %v1127
    %v1317 = vunpack.c.l.b16 %v1128
    %v1318 = vunpack.c.h.b16 %v1128
    %v1319 = vunpack.c.l.b16 %v1129
    %v1320 = vunpack.c.h.b16 %v1129
    %v1321 = vunpack.c.l.b16 %v1130
    %v1322 = vunpack.c.h.b16 %v1130
    %v1323 = vunpack.c.l.b16 %v1131
    %v1324 = vunpack.c.h.b16 %v1131
    %v1325 = vunpack.c.l.b16 %v1132
    %v1326 = vunpack.c.h.b16 %v1132
    %v1327 = vunpack.c.l.b16 %v1133
    %v1328 = vunpack.c.h.b16 %v1133
    %v1329 = vunpack.c.l.b16 %v1134
    %v1330 = vunpack.c.h.b16 %v1134
    %v1331 = vunpack.c.l.b16 %v1135
    %v1332 = vunpack.c.h.b16 %v1135
    %v1333 = vunpack.c.l.b16 %v1136
    %v1334 = vunpack.c.h.b16 %v1136
    %v1335 = vunpack.c.l.b16 %v1137
    %v1336 = vunpack.c.h.b16 %v1137
    %v1337 = vunpack.c.l.b16 %v1138
    %v1338 = vunpack.c.h.b16 %v1138
    %v1339 = vunpack.c.l.b16 %v1139
    %v1340 = vunpack.c.h.b16 %v1139
    %v1341 = vunpack.c.l.b16 %v1140
    %v1342 = vunpack.c.h.b16 %v1140
    %v1343 = vunpack.c.l.b16 %v1141
    %v1344 = vunpack.c.h.b16 %v1141
    %v1345 = vunpack.c.l.b16 %v1142
    %v1346 = vunpack.c.h.b16 %v1142
    %v1347 = vpack.c.b16 %v1221, %v1219
    %v1348 = vpack.c.b16 %v1222, %v1220
    %v1349 = vpack.c.b16 %v1225, %v1223
    %v1350 = vpack.c.b16 %v1226, %v1224
    %v1351 = vpack.c.b16 %v1229, %v1227
    %v1352 = vpack.c.b16 %v1230, %v1228
    %v1353 = vpack.c.b16 %v1233, %v1231
    %v1354 = vpack.c.b16 %v1234, %v1232
    %v1355 = vpack.c.b16 %v1237, %v1235
    %v1356 = vpack.c.b16 %v1238, %v1236
    %v1357 = vpack.c.b16 %v1241, %v1239
    %v1358 = vpack.c.b16 %v1242, %v1240
    %v1359 = vpack.c.b16 %v1245, %v1243
    %v1360 = vpack.c.b16 %v1246, %v1244
    %v1361 = vpack.c.b16 %v1249, %v1247
    %v1362 = vpack.c.b16 %v1250, %v1248
    %v1363 = vpack.c.b16 %v1253, %v1251
    %v1364 = vpack.c.b16 %v1254, %v1252
    %v1365 = vpack.c.b16 %v1257, %v1255
    %v1366 = vpack.c.b16 %v1258, %v1256
    %v1367 = vpack.c.b16 %v1261, %v1259
    %v1368 = vpack.c.b16 %v1262, %v1260
    %v1369 = vpack.c.b16 %v1265, %v1263
    %v1370 = vpack.c.b16 %v1266, %v1264
    %v1371 = vpack.c.b16 %v1269, %v1267
    %v1372 = vpack.c.b16 %v1270, %v1268
    %v1373 = vpack.c.b16 %v1273, %v1271
    %v1374 = vpack.c.b16 %v1274, %v1272
    %v1375 = vpack.c.b16 %v1277, %v1275
    %v1376 = vpack.c.b16 %v1278, %v1276
    %v1377 = vpack.c.b16 %v1281, %v1279
    %v1378 = vpack.c.b16 %v1282, %v1280
    %v1379 = vpack.c.b16 %v1285, %v1283
    %v1380 = vpack.c.b16 %v1286, %v1284
    %v1381 = vpack.c.b16 %v1289, %v1287
    %v1382 = vpack.c.b16 %v1290, %v1288
    %v1383 = vpack.c.b16 %v1293, %v1291
    %v1384 = vpack.c.b16 %v1294, %v1292
    %v1385 = vpack.c.b16 %v1297, %v1295
    %v1386 = vpack.c.b16 %v1298, %v1296
    %v1387 = vpack.c.b16 %v1301, %v1299
    %v1388 = vpack.c.b16 %v1302, %v1300
    %v1389 = vpack.c.b16 %v1305, %v1303
    %v1390 = vpack.c.b16 %v1306, %v1304
    %v1391 = vpack.c.b16 %v1309, %v1307
    %v1392 = vpack.c.b16 %v1310, %v1308
    %v1393 = vpack.c.b16 %v1313, %v1311
    %v1394 = vpack.c.b16 %v1314, %v1312
    %v1395 = vpack.c.b16 %v1317, %v1315
    %v1396 = vpack.c.b16 %v1318, %v1316
    %v1397 = vpack.c.b16 %v1321, %v1319
    %v1398 = vpack.c.b16 %v1322, %v1320
    %v1399 = vpack.c.b16 %v1325, %v1323
    %v1400 = vpack.c.b16 %v1326, %v1324
    %v1401 = vpack.c.b16 %v1329, %v1327
    %v1402 = vpack.c.b16 %v1330, %v1328
    %v1403 = vpack.c.b16 %v1333, %v1331
    %v1404 = vpack.c.b16 %v1334, %v1332
    %v1405 = vpack.c.b16 %v1337, %v1335
    %v1406 = vpack.c.b16 %v1338, %v1336
    %v1407 = vpack.c.b16 %v1341, %v1339
    %v1408 = vpack.c.b16 %v1342, %v1340
    %v1409 = vpack.c.b16 %v1345, %v1343
    %v1410 = vpack.c.b16 %v1346, %v1344
    %1475 = vmatprep.subr.bf16.mxu0 %v1348
    %1476 = vmatpush1.bf16.msra.mxu0 %v1347
    %1477 = vmatprep.subr.bf16.mxu0 %v1350
    %1478 = vmatpush1.bf16.msra.mxu0 %v1349
    %1479 = vmatprep.subr.bf16.mxu0 %v1352
    %1480 = vmatpush1.bf16.msra.mxu0 %v1351
    %1481 = vmatprep.subr.bf16.mxu0 %v1354
    %1482 = vmatpush1.bf16.msra.mxu0 %v1353
    %1483 = vmatprep.subr.bf16.mxu0 %v1356
    %1484 = vmatpush1.bf16.msra.mxu0 %v1355
    %1485 = vmatprep.subr.bf16.mxu0 %v1358
    %1486 = vmatpush1.bf16.msra.mxu0 %v1357
    %1487 = vmatprep.subr.bf16.mxu0 %v1360
    %1488 = vmatpush1.bf16.msra.mxu0 %v1359
    %1489 = vmatprep.subr.bf16.mxu0 %v1362
    %1490 = vmatpush1.bf16.msra.mxu0 %v1361
    %1491 = vmatprep.subr.bf16.mxu0 %v1364
    %1492 = vmatpush1.bf16.msra.mxu0 %v1363
    %1493 = vmatprep.subr.bf16.mxu0 %v1366
    %1494 = vmatpush1.bf16.msra.mxu0 %v1365
    %1495 = vmatprep.subr.bf16.mxu0 %v1368
    %1496 = vmatpush1.bf16.msra.mxu0 %v1367
    %1497 = vmatprep.subr.bf16.mxu0 %v1370
    %1498 = vmatpush1.bf16.msra.mxu0 %v1369
    %1499 = vmatprep.subr.bf16.mxu0 %v1372
    %1500 = vmatpush1.bf16.msra.mxu0 %v1371
    %1501 = vmatprep.subr.bf16.mxu0 %v1374
    %1502 = vmatpush1.bf16.msra.mxu0 %v1373
    %1503 = vmatprep.subr.bf16.mxu0 %v1376
    %1504 = vmatpush1.bf16.msra.mxu0 %v1375
    %1505 = vmatprep.subr.bf16.mxu0 %v1378
    %1506 = vmatpush1.bf16.msra.mxu0 %v1377
    %1507 = vmatprep.mubr.bf16.mxu0 %v1076
    %1508 = vmatmul.mubr.bf16.gmra.mrb[0].mxu0 %v1075
    %v1509 = vpop.f32.mrb[0].mxu0
    %v1510 = vadd.f32 %v1148, %v1509
    %v1511 = vpop.f32.mrb[0].mxu0
    %v1512 = vadd.f32 %v1152, %v1511
    %v1513 = vpop.f32.mrb[0].mxu0
    %v1514 = vpop.f32.mrb[0].mxu0
    %1515 = vdwg.mxu0
    %1516 = vmatprep.subr.bf16.mxu0 %v1380
    %1517 = vmatpush1.bf16.msra.mxu0 %v1379
    %1518 = vmatprep.subr.bf16.mxu0 %v1382
    %1519 = vmatpush1.bf16.msra.mxu0 %v1381
    %1520 = vmatprep.subr.bf16.mxu0 %v1384
    %1521 = vmatpush1.bf16.msra.mxu0 %v1383
    %1522 = vmatprep.subr.bf16.mxu0 %v1386
    %1523 = vmatpush1.bf16.msra.mxu0 %v1385
    %1524 = vmatprep.subr.bf16.mxu0 %v1388
    %1525 = vmatpush1.bf16.msra.mxu0 %v1387
    %1526 = vmatprep.subr.bf16.mxu0 %v1390
    %1527 = vmatpush1.bf16.msra.mxu0 %v1389
    %1528 = vmatprep.subr.bf16.mxu0 %v1392
    %1529 = vmatpush1.bf16.msra.mxu0 %v1391
    %1530 = vmatprep.subr.bf16.mxu0 %v1394
    %1531 = vmatpush1.bf16.msra.mxu0 %v1393
    %1532 = vmatprep.subr.bf16.mxu0 %v1396
    %1533 = vmatpush1.bf16.msra.mxu0 %v1395
    %1534 = vmatprep.subr.bf16.mxu0 %v1398
    %1535 = vmatpush1.bf16.msra.mxu0 %v1397
    %1536 = vmatprep.subr.bf16.mxu0 %v1400
    %1537 = vmatpush1.bf16.msra.mxu0 %v1399
    %1538 = vmatprep.subr.bf16.mxu0 %v1402
    %1539 = vmatpush1.bf16.msra.mxu0 %v1401
    %1540 = vmatprep.subr.bf16.mxu0 %v1404
    %1541 = vmatpush1.bf16.msra.mxu0 %v1403
    %1542 = vmatprep.subr.bf16.mxu0 %v1406
    %1543 = vmatpush1.bf16.msra.mxu0 %v1405
    %1544 = vmatprep.subr.bf16.mxu0 %v1408
    %1545 = vmatpush1.bf16.msra.mxu0 %v1407
    %1546 = vmatprep.subr.bf16.mxu0 %v1410
    %1547 = vmatpush1.bf16.msra.mxu0 %v1409
    %1548 = vmatprep.mubr.bf16.mxu0 %v1078
    %1549 = vmatmul.mubr.bf16.gmra.mrb[0].mxu0 %v1077
    %v1550 = vpop.f32.mrb[0].mxu0
    %v1551 = vadd.f32 %v1510, %v1550
    %v1552 = vpop.f32.mrb[0].mxu0
    %v1553 = vadd.f32 %v1512, %v1552
    %v1554 = vpop.f32.mrb[0].mxu0
    %v1555 = vpop.f32.mrb[0].mxu0
    %1556 = vdwg.mxu0
    %v1557 = vld [vmem:[%s13] sm:$0x3]
    %v1558 = vld [vmem:[%s14] sm:$0x3]
    %v1559 = vadd.f32 %v1551, %v1553
    %1560 = vadd.xlane.f32.xlu0 %v1559
    %v1561 = vpop.xlane.xlu0 %1560
    %v1562 = vrcp.pop 256.0
    %v1563 = vmul.f32 %v1561, %v1562
    %v1564 = vsub.f32 %v1551, %v1563
    %v1565 = vsub.f32 %v1553, %v1563
    %v1566 = vmul.f32 %v1564, %v1564
    %v1567 = vmul.f32 %v1565, %v1565
    %v1568 = vadd.f32 %v1566, %v1567
    %1569 = vadd.xlane.f32.xlu0 %v1568
    %v1570 = vpop.xlane.xlu0 %1569
    %v1571 = vmul.f32 %v1570, %v1562
    %v1572 = vadd.f32 %v1571, 1e-05
    %v1573 = vrsqrt.pop %v1572
    %v1574 = vmul.f32 %v1564, %v1573
    %v1575 = vmul.f32 %v1565, %v1573
    %v1577 = vlaneseq
    %v1578 = vshrl.u32 %v1577, 7
    %v1579 = vsub.s32 0, %v1578
    %v1580 = vrot.slane %v1557, %v1579
    %v1581 = vlaneseq
    %v1582 = vshrl.u32 %v1581, 7
    %v1583 = vsub.s32 1, %v1582
    %v1584 = vrot.slane %v1557, %v1583
    %v1587 = vmul.f32 %v1574, %v1580
    %v1588 = vmul.f32 %v1575, %v1584
    %v1590 = vlaneseq
    %v1591 = vshrl.u32 %v1590, 7
    %v1592 = vsub.s32 0, %v1591
    %v1593 = vrot.slane %v1558, %v1592
    %v1594 = vlaneseq
    %v1595 = vshrl.u32 %v1594, 7
    %v1596 = vsub.s32 1, %v1595
    %v1597 = vrot.slane %v1558, %v1596
    %v1600 = vadd.f32 %v1587, %v1593
    %v1601 = vadd.f32 %v1588, %v1597
    %v1602 = vmul.f32 %v1600, %v1600
    %v1603 = vmul.f32 %v1601, %v1601
    %v1604 = vadd.f32 %v1602, %v1603
    %1605 = vadd.xlane.f32.xlu0 %v1604
    %v1606 = vpop.xlane.xlu0 %1605
    %v1607 = vmax.f32 %v1606, 1e-24
    %v1608 = vrsqrt.pop %v1607
    %v1609 = vmul.f32 %v1600, %v1608
    %v1610 = vmul.f32 %v1601, %v1608
    %1611 = vst [vmem:[#allocation3] sm:$0xff] %v1609
    %1612 = vst [vmem:[#allocation3 + $0x8] sm:$0xff] %v1610
    %v1613 = vpack.c.bf16 %v1609, %v1609
    %v1614 = vpack.c.bf16 %v1610, %v1610
    %v1615 = vld [vmem:[%s15] sm:$0xff]
    %v1616 = vld [vmem:[%s15 + $0x8] sm:$0xff]
    %v1617 = vld [vmem:[%s15 + $0x10] sm:$0xff]
    %v1618 = vld [vmem:[%s15 + $0x18] sm:$0xff]
    %v1619 = vld [vmem:[%s15 + $0x20] sm:$0xff]
    %v1620 = vld [vmem:[%s15 + $0x28] sm:$0xff]
    %v1621 = vld [vmem:[%s15 + $0x30] sm:$0xff]
    %v1622 = vld [vmem:[%s15 + $0x38] sm:$0xff]
    %v1623 = vld [vmem:[%s15 + $0x40] sm:$0xff]
    %v1624 = vld [vmem:[%s15 + $0x48] sm:$0xff]
    %v1625 = vld [vmem:[%s15 + $0x50] sm:$0xff]
    %v1626 = vld [vmem:[%s15 + $0x58] sm:$0xff]
    %v1627 = vld [vmem:[%s15 + $0x60] sm:$0xff]
    %v1628 = vld [vmem:[%s15 + $0x68] sm:$0xff]
    %v1629 = vld [vmem:[%s15 + $0x70] sm:$0xff]
    %v1630 = vld [vmem:[%s15 + $0x78] sm:$0xff]
    %v1631 = vld [vmem:[%s15 + $0x80] sm:$0xff]
    %v1632 = vld [vmem:[%s15 + $0x88] sm:$0xff]
    %v1633 = vld [vmem:[%s15 + $0x90] sm:$0xff]
    %v1634 = vld [vmem:[%s15 + $0x98] sm:$0xff]
    %v1635 = vld [vmem:[%s15 + $0xa0] sm:$0xff]
    %v1636 = vld [vmem:[%s15 + $0xa8] sm:$0xff]
    %v1637 = vld [vmem:[%s15 + $0xb0] sm:$0xff]
    %v1638 = vld [vmem:[%s15 + $0xb8] sm:$0xff]
    %v1639 = vld [vmem:[%s15 + $0xc0] sm:$0xff]
    %v1640 = vld [vmem:[%s15 + $0xc8] sm:$0xff]
    %v1641 = vld [vmem:[%s15 + $0xd0] sm:$0xff]
    %v1642 = vld [vmem:[%s15 + $0xd8] sm:$0xff]
    %v1643 = vld [vmem:[%s15 + $0xe0] sm:$0xff]
    %v1644 = vld [vmem:[%s15 + $0xe8] sm:$0xff]
    %v1645 = vld [vmem:[%s15 + $0xf0] sm:$0xff]
    %v1646 = vld [vmem:[%s15 + $0xf8] sm:$0xff]
    %v1647 = vld [vmem:[%s16] sm:$0x3]
    %v1649 = vlaneseq
    %v1650 = vshrl.u32 %v1649, 7
    %v1651 = vsub.s32 0, %v1650
    %v1652 = vrot.slane %v1647, %v1651
    %v1653 = vlaneseq
    %v1654 = vshrl.u32 %v1653, 7
    %v1655 = vsub.s32 1, %v1654
    %v1656 = vrot.slane %v1647, %v1655
    %v1691 = vunpack.c.l.b16 %v1615
    %v1692 = vunpack.c.h.b16 %v1615
    %v1693 = vunpack.c.l.b16 %v1616
    %v1694 = vunpack.c.h.b16 %v1616
    %v1695 = vunpack.c.l.b16 %v1617
    %v1696 = vunpack.c.h.b16 %v1617
    %v1697 = vunpack.c.l.b16 %v1618
    %v1698 = vunpack.c.h.b16 %v1618
    %v1699 = vunpack.c.l.b16 %v1619
    %v1700 = vunpack.c.h.b16 %v1619
    %v1701 = vunpack.c.l.b16 %v1620
    %v1702 = vunpack.c.h.b16 %v1620
    %v1703 = vunpack.c.l.b16 %v1621
    %v1704 = vunpack.c.h.b16 %v1621
    %v1705 = vunpack.c.l.b16 %v1622
    %v1706 = vunpack.c.h.b16 %v1622
    %v1707 = vunpack.c.l.b16 %v1623
    %v1708 = vunpack.c.h.b16 %v1623
    %v1709 = vunpack.c.l.b16 %v1624
    %v1710 = vunpack.c.h.b16 %v1624
    %v1711 = vunpack.c.l.b16 %v1625
    %v1712 = vunpack.c.h.b16 %v1625
    %v1713 = vunpack.c.l.b16 %v1626
    %v1714 = vunpack.c.h.b16 %v1626
    %v1715 = vunpack.c.l.b16 %v1627
    %v1716 = vunpack.c.h.b16 %v1627
    %v1717 = vunpack.c.l.b16 %v1628
    %v1718 = vunpack.c.h.b16 %v1628
    %v1719 = vunpack.c.l.b16 %v1629
    %v1720 = vunpack.c.h.b16 %v1629
    %v1721 = vunpack.c.l.b16 %v1630
    %v1722 = vunpack.c.h.b16 %v1630
    %v1723 = vunpack.c.l.b16 %v1631
    %v1724 = vunpack.c.h.b16 %v1631
    %v1725 = vunpack.c.l.b16 %v1632
    %v1726 = vunpack.c.h.b16 %v1632
    %v1727 = vunpack.c.l.b16 %v1633
    %v1728 = vunpack.c.h.b16 %v1633
    %v1729 = vunpack.c.l.b16 %v1634
    %v1730 = vunpack.c.h.b16 %v1634
    %v1731 = vunpack.c.l.b16 %v1635
    %v1732 = vunpack.c.h.b16 %v1635
    %v1733 = vunpack.c.l.b16 %v1636
    %v1734 = vunpack.c.h.b16 %v1636
    %v1735 = vunpack.c.l.b16 %v1637
    %v1736 = vunpack.c.h.b16 %v1637
    %v1737 = vunpack.c.l.b16 %v1638
    %v1738 = vunpack.c.h.b16 %v1638
    %v1739 = vunpack.c.l.b16 %v1639
    %v1740 = vunpack.c.h.b16 %v1639
    %v1741 = vunpack.c.l.b16 %v1640
    %v1742 = vunpack.c.h.b16 %v1640
    %v1743 = vunpack.c.l.b16 %v1641
    %v1744 = vunpack.c.h.b16 %v1641
    %v1745 = vunpack.c.l.b16 %v1642
    %v1746 = vunpack.c.h.b16 %v1642
    %v1747 = vunpack.c.l.b16 %v1643
    %v1748 = vunpack.c.h.b16 %v1643
    %v1749 = vunpack.c.l.b16 %v1644
    %v1750 = vunpack.c.h.b16 %v1644
    %v1751 = vunpack.c.l.b16 %v1645
    %v1752 = vunpack.c.h.b16 %v1645
    %v1753 = vunpack.c.l.b16 %v1646
    %v1754 = vunpack.c.h.b16 %v1646
    %v1755 = vpack.c.b16 %v1693, %v1691
    %v1756 = vpack.c.b16 %v1694, %v1692
    %v1757 = vpack.c.b16 %v1697, %v1695
    %v1758 = vpack.c.b16 %v1698, %v1696
    %v1759 = vpack.c.b16 %v1701, %v1699
    %v1760 = vpack.c.b16 %v1702, %v1700
    %v1761 = vpack.c.b16 %v1705, %v1703
    %v1762 = vpack.c.b16 %v1706, %v1704
    %v1763 = vpack.c.b16 %v1709, %v1707
    %v1764 = vpack.c.b16 %v1710, %v1708
    %v1765 = vpack.c.b16 %v1713, %v1711
    %v1766 = vpack.c.b16 %v1714, %v1712
    %v1767 = vpack.c.b16 %v1717, %v1715
    %v1768 = vpack.c.b16 %v1718, %v1716
    %v1769 = vpack.c.b16 %v1721, %v1719
    %v1770 = vpack.c.b16 %v1722, %v1720
    %v1771 = vpack.c.b16 %v1725, %v1723
    %v1772 = vpack.c.b16 %v1726, %v1724
    %v1773 = vpack.c.b16 %v1729, %v1727
    %v1774 = vpack.c.b16 %v1730, %v1728
    %v1775 = vpack.c.b16 %v1733, %v1731
    %v1776 = vpack.c.b16 %v1734, %v1732
    %v1777 = vpack.c.b16 %v1737, %v1735
    %v1778 = vpack.c.b16 %v1738, %v1736
    %v1779 = vpack.c.b16 %v1741, %v1739
    %v1780 = vpack.c.b16 %v1742, %v1740
    %v1781 = vpack.c.b16 %v1745, %v1743
    %v1782 = vpack.c.b16 %v1746, %v1744
    %v1783 = vpack.c.b16 %v1749, %v1747
    %v1784 = vpack.c.b16 %v1750, %v1748
    %v1785 = vpack.c.b16 %v1753, %v1751
    %v1786 = vpack.c.b16 %v1754, %v1752
    %1819 = vmatprep.subr.bf16.mxu0 %v1756
    %1820 = vmatpush1.bf16.msra.mxu0 %v1755
    %1821 = vmatprep.subr.bf16.mxu0 %v1758
    %1822 = vmatpush1.bf16.msra.mxu0 %v1757
    %1823 = vmatprep.subr.bf16.mxu0 %v1760
    %1824 = vmatpush1.bf16.msra.mxu0 %v1759
    %1825 = vmatprep.subr.bf16.mxu0 %v1762
    %1826 = vmatpush1.bf16.msra.mxu0 %v1761
    %1827 = vmatprep.subr.bf16.mxu0 %v1764
    %1828 = vmatpush1.bf16.msra.mxu0 %v1763
    %1829 = vmatprep.subr.bf16.mxu0 %v1766
    %1830 = vmatpush1.bf16.msra.mxu0 %v1765
    %1831 = vmatprep.subr.bf16.mxu0 %v1768
    %1832 = vmatpush1.bf16.msra.mxu0 %v1767
    %1833 = vmatprep.subr.bf16.mxu0 %v1770
    %1834 = vmatpush1.bf16.msra.mxu0 %v1769
    %1835 = vmatprep.subr.bf16.mxu0 %v1772
    %1836 = vmatpush1.bf16.msra.mxu0 %v1771
    %1837 = vmatprep.subr.bf16.mxu0 %v1774
    %1838 = vmatpush1.bf16.msra.mxu0 %v1773
    %1839 = vmatprep.subr.bf16.mxu0 %v1776
    %1840 = vmatpush1.bf16.msra.mxu0 %v1775
    %1841 = vmatprep.subr.bf16.mxu0 %v1778
    %1842 = vmatpush1.bf16.msra.mxu0 %v1777
    %1843 = vmatprep.subr.bf16.mxu0 %v1780
    %1844 = vmatpush1.bf16.msra.mxu0 %v1779
    %1845 = vmatprep.subr.bf16.mxu0 %v1782
    %1846 = vmatpush1.bf16.msra.mxu0 %v1781
    %1847 = vmatprep.subr.bf16.mxu0 %v1784
    %1848 = vmatpush1.bf16.msra.mxu0 %v1783
    %1849 = vmatprep.subr.bf16.mxu0 %v1786
    %1850 = vmatpush1.bf16.msra.mxu0 %v1785
    %1851 = vmatprep.mubr.bf16.mxu0 %v1614
    %1852 = vmatmul.mubr.bf16.gmra.mrb[0].mxu0 %v1613
    %v1853 = vpop.f32.mrb[0].mxu0
    %v1854 = vadd.f32 %v1652, %v1853
    %v1855 = vpop.f32.mrb[0].mxu0
    %v1856 = vadd.f32 %v1656, %v1855
    %v1857 = vpop.f32.mrb[0].mxu0
    %v1858 = vpop.f32.mrb[0].mxu0
    %1859 = vdwg.mxu0
    %v1860 = vmul.f32 %v1854, %v1854
    %v1861 = vmul.f32 %v1856, %v1856
    %v1862 = vmul.f32 %v1854, %v1860
    %v1863 = vmul.f32 %v1856, %v1861
    %v1864 = vmul.f32 %v1862, 0.044715
    %v1865 = vmul.f32 %v1863, 0.044715
    %v1866 = vadd.f32 %v1854, %v1864
    %v1867 = vadd.f32 %v1856, %v1865
    %v1868 = vmul.f32 %v1866, 0.7978846
    %v1869 = vmul.f32 %v1867, 0.7978846
    %v1870 = vtanh.pop %v1868
    %v1871 = vtanh.pop %v1869
    %v1872 = vadd.f32 %v1870, 1.0
    %v1873 = vadd.f32 %v1871, 1.0
    %v1874 = vmul.f32 %v1872, 0.5
    %v1875 = vmul.f32 %v1873, 0.5
    %v1876 = vmul.f32 %v1854, %v1874
    %v1877 = vmul.f32 %v1856, %v1875
    %v1878 = vld [vmem:[%s17] sm:$0x1]
    %v1880 = vlaneseq
    %v1881 = vshrl.u32 %v1880, 7
    %v1882 = vsub.s32 0, %v1881
    %v1883 = vrot.slane %v1878, %v1882
    %v1885 = vmul.f32 %v1876, %v1883
    %1886 = vadd.xlane.f32.xlu0 %v1885
    %v1887 = vpop.xlane.xlu0 %1886
    %v1888 = vld [vmem:[#allocation2] sm:$0x1]
    %v1890 = vlaneseq
    %v1891 = vshrl.u32 %v1890, 7
    %v1892 = vsub.s32 0, %v1891
    %v1893 = vrot.slane %v1888, %v1892
    %v1895 = vadd.f32 %v1887, %v1893
    %v1896 = vxor.u32 %v1895, 2147483648
    %v1897 = vmul.f32 %v1896, 1.442695
    %v1898 = vpow.pop %v1897
    %v1899 = vadd.f32 %v1898, 1.0
    %v1900 = vrcp.pop %v1899
    %v1901 = vmul.f32 1.0, %v1900
    %v1902 = vpack.c.bf16 %v1877, %v1877
    %v1903 = vld [vmem:[%s19] sm:$0xf]
    %v1904 = vld [vmem:[%s19 + $0x4] sm:$0xf]
    %v1905 = vld [vmem:[%s19 + $0x8] sm:$0xf]
    %v1906 = vld [vmem:[%s19 + $0xc] sm:$0xf]
    %v1907 = vld [vmem:[%s19 + $0x10] sm:$0xf]
    %v1908 = vld [vmem:[%s19 + $0x14] sm:$0xf]
    %v1909 = vld [vmem:[%s19 + $0x18] sm:$0xf]
    %v1910 = vld [vmem:[%s19 + $0x1c] sm:$0xf]
    %v1911 = vld [vmem:[%s19 + $0x20] sm:$0xf]
    %v1912 = vld [vmem:[%s19 + $0x24] sm:$0xf]
    %v1913 = vld [vmem:[%s19 + $0x28] sm:$0xf]
    %v1914 = vld [vmem:[%s19 + $0x2c] sm:$0xf]
    %v1915 = vld [vmem:[%s19 + $0x30] sm:$0xf]
    %v1916 = vld [vmem:[%s19 + $0x34] sm:$0xf]
    %v1917 = vld [vmem:[%s19 + $0x38] sm:$0xf]
    %v1918 = vld [vmem:[%s19 + $0x3c] sm:$0xf]
    %v1919 = vld [vmem:[%s20] sm:$0x1]
    %v1921 = vlaneseq
    %v1922 = vshrl.u32 %v1921, 7
    %v1923 = vsub.s32 0, %v1922
    %v1924 = vrot.slane %v1919, %v1923
    %v1942 = vunpack.c.l.b16 %v1903
    %v1943 = vunpack.c.l.b16 %v1904
    %v1944 = vunpack.c.l.b16 %v1905
    %v1945 = vunpack.c.l.b16 %v1906
    %v1946 = vunpack.c.l.b16 %v1907
    %v1947 = vunpack.c.l.b16 %v1908
    %v1948 = vunpack.c.l.b16 %v1909
    %v1949 = vunpack.c.l.b16 %v1910
    %v1950 = vunpack.c.l.b16 %v1911
    %v1951 = vunpack.c.l.b16 %v1912
    %v1952 = vunpack.c.l.b16 %v1913
    %v1953 = vunpack.c.l.b16 %v1914
    %v1954 = vunpack.c.l.b16 %v1915
    %v1955 = vunpack.c.l.b16 %v1916
    %v1956 = vunpack.c.l.b16 %v1917
    %v1957 = vunpack.c.l.b16 %v1918
    %v1958 = vpack.c.b16 %v1943, %v1942
    %v1959 = vpack.c.b16 %v1945, %v1944
    %v1960 = vpack.c.b16 %v1947, %v1946
    %v1961 = vpack.c.b16 %v1949, %v1948
    %v1962 = vpack.c.b16 %v1951, %v1950
    %v1963 = vpack.c.b16 %v1953, %v1952
    %v1964 = vpack.c.b16 %v1955, %v1954
    %v1965 = vpack.c.b16 %v1957, %v1956
    %1974 = vmatprep.subr.bf16.mxu0 0
    %1975 = vmatpush1.bf16.msra.mxu0 %v1958
    %1976 = vmatprep.subr.bf16.mxu0 0
    %1977 = vmatpush1.bf16.msra.mxu0 %v1959
    %1978 = vmatprep.subr.bf16.mxu0 0
    %1979 = vmatpush1.bf16.msra.mxu0 %v1960
    %1980 = vmatprep.subr.bf16.mxu0 0
    %1981 = vmatpush1.bf16.msra.mxu0 %v1961
    %1982 = vmatprep.subr.bf16.mxu0 0
    %1983 = vmatpush1.bf16.msra.mxu0 %v1962
    %1984 = vmatprep.subr.bf16.mxu0 0
    %1985 = vmatpush1.bf16.msra.mxu0 %v1963
    %1986 = vmatprep.subr.bf16.mxu0 0
    %1987 = vmatpush1.bf16.msra.mxu0 %v1964
    %1988 = vmatprep.subr.bf16.mxu0 0
    %1989 = vmatpush1.bf16.msra.mxu0 %v1965
    %1990 = vmatprep.subr.bf16.mxu0 0
    %1991 = vmatpush1.bf16.msra.mxu0 0
    %1992 = vmatprep.subr.bf16.mxu0 0
    %1993 = vmatpush1.bf16.msra.mxu0 0
    %1994 = vmatprep.subr.bf16.mxu0 0
    %1995 = vmatpush1.bf16.msra.mxu0 0
    %1996 = vmatprep.subr.bf16.mxu0 0
    %1997 = vmatpush1.bf16.msra.mxu0 0
    %1998 = vmatprep.subr.bf16.mxu0 0
    %1999 = vmatpush1.bf16.msra.mxu0 0
    %2000 = vmatprep.subr.bf16.mxu0 0
    %2001 = vmatpush1.bf16.msra.mxu0 0
    %2002 = vmatprep.subr.bf16.mxu0 0
    %2003 = vmatpush1.bf16.msra.mxu0 0
    %2004 = vmatprep.subr.bf16.mxu0 0
    %2005 = vmatpush1.bf16.msra.mxu0 0
    %2006 = vmatprep.mubr.bf16.mxu0 0
    %2007 = vmatmul.mubr.bf16.gmra.mrb[0].mxu0 %v1902
    %v2008 = vpop.f32.mrb[0].mxu0
    %v2009 = vadd.f32 %v1924, %v2008
    %v2010 = vpop.f32.mrb[0].mxu0
    %v2011 = vpop.f32.mrb[0].mxu0
    %v2012 = vpop.f32.mrb[0].mxu0
    %2013 = vdwg.mxu0
    %v2014 = vmul.f32 %v2009, %v2009
    %v2015 = vmul.f32 %v2009, %v2014
    %v2016 = vmul.f32 %v2015, 0.044715
    %v2017 = vadd.f32 %v2009, %v2016
    %v2018 = vmul.f32 %v2017, 0.7978846
    %v2019 = vtanh.pop %v2018
    %v2020 = vadd.f32 %v2019, 1.0
    %v2021 = vmul.f32 %v2020, 0.5
    %v2022 = vmul.f32 %v2009, %v2021
    %v2023 = vpack.c.bf16 %v2022, %v2022
    %v2024 = vld [vmem:[%s21] sm:$0xf]
    %v2025 = vld [vmem:[%s21 + $0x4] sm:$0xf]
    %v2026 = vld [vmem:[%s21 + $0x8] sm:$0xf]
    %v2027 = vld [vmem:[%s21 + $0xc] sm:$0xf]
    %v2028 = vld [vmem:[%s21 + $0x10] sm:$0xf]
    %v2029 = vld [vmem:[%s21 + $0x14] sm:$0xf]
    %v2030 = vld [vmem:[%s21 + $0x18] sm:$0xf]
    %v2031 = vld [vmem:[%s21 + $0x1c] sm:$0xf]
    %v2032 = vld [vmem:[%s22] sm:$0x1]
    %v2034 = vlaneseq
    %v2035 = vshrl.u32 %v2034, 7
    %v2036 = vsub.s32 0, %v2035
    %v2037 = vrot.slane %v2032, %v2036
    %v2047 = vunpack.c.l.b16 %v2024
    %v2048 = vunpack.c.l.b16 %v2025
    %v2049 = vunpack.c.l.b16 %v2026
    %v2050 = vunpack.c.l.b16 %v2027
    %v2051 = vunpack.c.l.b16 %v2028
    %v2052 = vunpack.c.l.b16 %v2029
    %v2053 = vunpack.c.l.b16 %v2030
    %v2054 = vunpack.c.l.b16 %v2031
    %v2055 = vpack.c.b16 %v2048, %v2047
    %v2056 = vpack.c.b16 %v2050, %v2049
    %v2057 = vpack.c.b16 %v2052, %v2051
    %v2058 = vpack.c.b16 %v2054, %v2053
    %vm2063 = vcmask 523264
    %v2065 = vsel %vm2063, %v2023, 0
    %2067 = vmatprep.subr.bf16.mxu0 0
    %2068 = vmatpush1.bf16.msra.mxu0 %v2055
    %2069 = vmatprep.subr.bf16.mxu0 0
    %2070 = vmatpush1.bf16.msra.mxu0 %v2056
    %2071 = vmatprep.subr.bf16.mxu0 0
    %2072 = vmatpush1.bf16.msra.mxu0 %v2057
    %2073 = vmatprep.subr.bf16.mxu0 0
    %2074 = vmatpush1.bf16.msra.mxu0 %v2058
    %2075 = vmatprep.subr.bf16.mxu0 0
    %2076 = vmatpush1.bf16.msra.mxu0 0
    %2077 = vmatprep.subr.bf16.mxu0 0
    %2078 = vmatpush1.bf16.msra.mxu0 0
    %2079 = vmatprep.subr.bf16.mxu0 0
    %2080 = vmatpush1.bf16.msra.mxu0 0
    %2081 = vmatprep.subr.bf16.mxu0 0
    %2082 = vmatpush1.bf16.msra.mxu0 0
    %2083 = vmatprep.subr.bf16.mxu0 0
    %2084 = vmatpush1.bf16.msra.mxu0 0
    %2085 = vmatprep.subr.bf16.mxu0 0
    %2086 = vmatpush1.bf16.msra.mxu0 0
    %2087 = vmatprep.subr.bf16.mxu0 0
    %2088 = vmatpush1.bf16.msra.mxu0 0
    %2089 = vmatprep.subr.bf16.mxu0 0
    %2090 = vmatpush1.bf16.msra.mxu0 0
    %2091 = vmatprep.subr.bf16.mxu0 0
    %2092 = vmatpush1.bf16.msra.mxu0 0
    %2093 = vmatprep.subr.bf16.mxu0 0
    %2094 = vmatpush1.bf16.msra.mxu0 0
    %2095 = vmatprep.subr.bf16.mxu0 0
    %2096 = vmatpush1.bf16.msra.mxu0 0
    %2097 = vmatprep.subr.bf16.mxu0 0
    %2098 = vmatpush1.bf16.msra.mxu0 0
    %2099 = vmatprep.mubr.bf16.mxu0 0
    %2100 = vmatmul.mubr.bf16.gmra.mrb[0].mxu0 %v2065
    %v2101 = vpop.f32.mrb[0].mxu0
    %v2102 = vadd.f32 %v2037, %v2101
    %v2103 = vpop.f32.mrb[0].mxu0
    %v2104 = vpop.f32.mrb[0].mxu0
    %v2105 = vpop.f32.mrb[0].mxu0
    %2106 = vdwg.mxu0
    %v2107 = vlaneseq
    %v2108 = vand.u32 %v2107, 127
    %vm2109 = vcmp.eq.s32.totalorder %v2108, 0
    %2111 = vset.pattern.permute.xlu0 0
    %2112 = vperm.xlu0 %2111, %v1901
    %v2113 = vpop.permute.xlu0 %2112
    %v2115 = vsel %vm2109, %v2113, %v2102
    %2116 = vst [vmem:[%s24] sm:$0xff] %v2115
    // Predicated region
    $region94: #{fwm_dynamics_forward.1} parent=1 // pred_check
      _
    $region95: #{fwm_dynamics_forward.1} parent=1 // pred_check_branch
      %2118 = sbr.rel (0) target = $region97
    $region96: #{fwm_dynamics_forward.1} parent=1 // pred_region
      %s2120 = ssub.s32 256, 256
      %2121 = vsyncadd [#allocation4], %s2120
      %s2123 = sshll.u32 [#allocation3], 4
      %s2124 = int_to_ptr.vmem [resolvable:$true] %s2123
      %2126 = dma.vmem_to_hbm [thread:$0]  %s2124, 256, %s23, [#allocation4]
    $region97: #{fwm_dynamics_forward.1} parent=1 // pred_fallthru
      _
    // Predicated region
    $region98: #{fwm_dynamics_forward.1} parent=1 // pred_check
      _
    $region99: #{fwm_dynamics_forward.1} parent=1 // pred_check_branch
      %2128 = sbr.rel (0) target = $region101
    $region100: #{fwm_dynamics_forward.1} parent=1 // pred_region
      _
    $region101: #{fwm_dynamics_forward.1} parent=1 // pred_fallthru
      _
    // Predicated region
    $region102: #{fwm_dynamics_forward.1} parent=1 // pred_check
      _
    $region103: #{fwm_dynamics_forward.1} parent=1 // pred_check_branch
      %2130 = sbr.rel (0) target = $region105
    $region104: #{fwm_dynamics_forward.1} parent=1 // pred_region
      %2131 = dma.done [#allocation4], 256
    $region105: #{fwm_dynamics_forward.1} parent=1 // pred_fallthru
      _
    // Predicated region
    $region106: #{fwm_dynamics_forward.1} parent=1 // pred_check
      _
    $region107: #{fwm_dynamics_forward.1} parent=1 // pred_check_branch
      %2133 = sbr.rel (0) target = $region109
    $region108: #{fwm_dynamics_forward.1} parent=1 // pred_region
      _
    $region109: #{fwm_dynamics_forward.1} parent=1 // pred_fallthru
      _
    %2134 = vsyncpa [#allocation4], 1

</llo_original>
